<compile_context>
chip_gen: v7x
topology: tpu7x:2x2x1
jax: 0.10.0
libtpu: 0.0.40
codegen_flags: <defaults>
</compile_context>

<pallas_src>
import functools

import jax
import jax.numpy as jnp
import numpy as np
from jax.experimental import pallas as pl
from jax.experimental.pallas import tpu as pltpu


# --------------------------------------------------------------------------
# In-kernel helpers
# --------------------------------------------------------------------------
def _dw3x3_dense(act, taps_ref, row0, cblk, padc, padl, padr):
    """Dense (stride-1) 3x3 depthwise conv in the flattened (W*C)-lane layout.

    act:       (Nb, H, W*C) f32 activation
    taps_ref:  (rows, W*C) f32; rows row0..row0+8 hold k[dh, dw, :] tiled over W
               (BN scale already folded into the taps)
    cblk:      C  (lane width of one spatial W position)
    padc/padl/padr: (Nb, H+2, W*C) f32 VMEM scratch (center / left / right
               neighbour planes).
    Returns (Nb, H, W*C) f32.
    """
    nb, h, wc = act.shape
    zrow = jnp.zeros((nb, 1, wc), jnp.float32)
    # Border-only clear: only the two zero rows of the H padding are written;
    # the W padding is handled by the masked lane shifts below.
    padc[:, 0:1, :] = zrow
    padc[:, h + 1:h + 2, :] = zrow
    padc[:, 1:h + 1, :] = act

    xc = padc[...]                                            # (Nb, H+2, W*C)
    lane = jax.lax.broadcasted_iota(jnp.int32, xc.shape, 2)
    # left-neighbour plane:  xl[..., w*C+c] = xc[..., (w-1)*C+c], zero at w==0
    padl[...] = jnp.where(lane >= cblk,
                          pltpu.roll(xc, cblk, axis=2), 0.0)
    # right-neighbour plane: xr[..., w*C+c] = xc[..., (w+1)*C+c], zero at w==W-1
    padr[...] = jnp.where(lane < wc - cblk,
                          pltpu.roll(xc, wc - cblk, axis=2), 0.0)

    planes = (padl, padc, padr)                               # dw = 0, 1, 2
    acc = None
    for dh in range(3):
        for dwc in range(3):
            r = row0 + dh * 3 + dwc
            tap = taps_ref[r:r + 1, :]                        # (1, W*C)
            term = planes[dwc][:, dh:dh + h, :] * tap         # lane-dense VPU
            acc = term if acc is None else acc + term         # first-tap init
    return acc


# --------------------------------------------------------------------------
# Fused kernels
# --------------------------------------------------------------------------
def _identity_kernel(xsc_ref, xres_ref, w1_ref, w3_ref, taps_ref, shifts_ref,
                     o_ref, padc, padl, padr, *, cb):
    """stride=1, in==out ShuffleUnit (channel split + identity shortcut).

    xsc_ref/xres_ref: (Nb, H, W*Cb) bf16  (halves pre-split in the wrapper)
    w1_ref/w3_ref:    (W*Cb, W*Cb) bf16 block-diagonal 1x1 weights (BN-scale folded)
    taps_ref:         (9, W*Cb) f32 depthwise taps (BN-scale folded, tiled over W)
    shifts_ref:       (2, W*Cb) f32  [row0 = b1, row1 = b3 + b2 @ w3]
    o_ref:            (2, Nb, H, W*Cb) bf16 branch-major output
    """
    nb, h, wcb = xres_ref.shape

    # shortcut half: exact pass-through (pure dense copy).
    o_ref[0] = xsc_ref[...].astype(o_ref.dtype)

    # residual: 1x1 + BN + ReLU  (block-diagonal matmul on the MXU)
    r1 = jnp.dot(xres_ref[...].reshape(nb * h, wcb), w1_ref[...],
                 preferred_element_type=jnp.float32)
    r1 = jnp.maximum(r1 + shifts_ref[0:1, :], 0.0)

    # dw3x3 + BN (scale folded into taps, shift folded into the next shift)
    d = _dw3x3_dense(r1.reshape(nb, h, wcb), taps_ref, 0, cb, padc, padl, padr)

    # 1x1 + BN + ReLU
    r2 = jnp.dot(d.reshape(nb * h, wcb).astype(jnp.bfloat16), w3_ref[...],
                 preferred_element_type=jnp.float32)
    r2 = jnp.maximum(r2 + shifts_ref[1:2, :], 0.0)
    o_ref[1] = r2.reshape(nb, h, wcb).astype(o_ref.dtype)


def _down_kernel(x_ref, w1_ref, b1_ref, taps_ref, w3_ref, w2_ref, shout_ref,
                 o_ref, padc, padl, padr, dwbuf, *, c_in, stride):
    """stride!=1 (or channel-changing) ShuffleUnit: two convolutional branches.

    x_ref:     (Nb, H, W*C) bf16
    w1_ref:    (W*C, W*C)        bf16 block-diag 1x1 (residual, scale folded)
    b1_ref:    (1, W*C)          f32
    taps_ref:  (18, W*C)         f32  rows 0-8 residual dw, rows 9-17 shortcut dw
    w3_ref:    (W*C, Wout*Ch)    bf16 block-diag 1x1 with stride-W selection folded in
    w2_ref:    (W*C, Wout*Ch)    bf16 (shortcut, ditto)
    shout_ref: (2, Wout*Ch)      f32  [row0 residual shift, row1 shortcut shift]
    o_ref:     (2, Nb, Hout, Wout*Ch) bf16
    dwbuf:     (Nb, H, W*C)      f32 scratch for the single strided H subsample
    """
    nb, h, wc = x_ref.shape
    hout = o_ref.shape[2]
    wch = o_ref.shape[3]

    def subsample_rows(dense):
        # Single strided ref read per branch (instead of 9 strided taps).
        if stride == 1:
            return dense
        dwbuf[...] = dense
        return dwbuf[:, pl.ds(0, hout, stride=stride), :]

    x = x_ref[...]

    # ---- shortcut branch: dw3x3(stride) + BN -> 1x1 + BN + ReLU ----
    dsc = subsample_rows(
        _dw3x3_dense(x.astype(jnp.float32), taps_ref, 9, c_in, padc, padl, padr))
    ys = jnp.dot(dsc.reshape(nb * hout, wc).astype(jnp.bfloat16), w2_ref[...],
                 preferred_element_type=jnp.float32)
    ys = jnp.maximum(ys + shout_ref[1:2, :], 0.0)
    o_ref[0] = ys.reshape(nb, hout, wch).astype(o_ref.dtype)

    # ---- residual branch: 1x1+BN+ReLU -> dw3x3(stride)+BN -> 1x1+BN+ReLU ----
    r1 = jnp.dot(x.reshape(nb * h, wc), w1_ref[...],
                 preferred_element_type=jnp.float32)
    r1 = jnp.maximum(r1 + b1_ref[...], 0.0)
    dres = subsample_rows(
        _dw3x3_dense(r1.reshape(nb, h, wc), taps_ref, 0, c_in, padc, padl, padr))
    yr = jnp.dot(dres.reshape(nb * hout, wc).astype(jnp.bfloat16), w3_ref[...],
                 preferred_element_type=jnp.float32)
    yr = jnp.maximum(yr + shout_ref[0:1, :], 0.0)
    o_ref[1] = yr.reshape(nb, hout, wch).astype(o_ref.dtype)


# --------------------------------------------------------------------------
# Host-side parameter preparation (weight folding, block-diag expansion)
# --------------------------------------------------------------------------
def _block_diag(w, w_in, w_out, stride):
    """(Cin, Cout) 1x1 weight -> (W_in*Cin, W_out*Cout) block-diagonal weight.

    Block (stride*wo, wo) = w; with stride>1 this also performs the stride-W
    column selection of the depthwise conv that precedes the 1x1."""
    cin, cout = w.shape
    m = jnp.zeros((w_in, cin, w_out, cout), jnp.float32)
    io = jnp.arange(w_out)
    m = m.at[io * stride, :, io, :].set(w.astype(jnp.float32))
    return m.reshape(w_in * cin, w_out * cout)


def _tile_row(v, reps):
    return jnp.tile(jnp.asarray(v, jnp.float32).reshape(1, -1), (1, reps))


def _prepare_identity(p, w_spatial):
    cb = p["r_w1"].shape[0]
    w1f = p["r_w1"] * p["r_s1"][None, :]
    w3f = p["r_w3"] * p["r_s3"][None, :]
    k2f = p["r_k2"] * p["r_s2"][None, None, :]
    b3c = p["r_b3"] + p["r_b2"] @ w3f            # fold dw BN shift into final shift
    return dict(
        w1=_block_diag(w1f, w_spatial, w_spatial, 1).astype(jnp.bfloat16),
        w3=_block_diag(w3f, w_spatial, w_spatial, 1).astype(jnp.bfloat16),
        taps=jnp.tile(k2f.reshape(9, cb), (1, w_spatial)).astype(jnp.float32),
        shifts=jnp.concatenate(
            [_tile_row(p["r_b1"], w_spatial),
             _tile_row(b3c, w_spatial)], axis=0).astype(jnp.float32),
    )


def _prepare_down(p, w_spatial, stride):
    c = p["r_w1"].shape[0]
    ch = p["r_w3"].shape[1]
    wout = (w_spatial - 1) // stride + 1
    w1f = p["r_w1"] * p["r_s1"][None, :]
    w3f = p["r_w3"] * p["r_s3"][None, :]
    w2f = p["s_w2"] * p["s_s2"][None, :]
    k2f = p["r_k2"] * p["r_s2"][None, None, :]
    k1f = p["s_k1"] * p["s_s1"][None, None, :]
    b3c = p["r_b3"] + p["r_b2"] @ w3f
    b2c = p["s_b2"] + p["s_b1"] @ w2f
    taps = jnp.concatenate([k2f.reshape(9, c), k1f.reshape(9, c)], axis=0)
    prep = dict(
        w1=_block_diag(w1f, w_spatial, w_spatial, 1).astype(jnp.bfloat16),
        w3=_block_diag(w3f, w_spatial, wout, stride).astype(jnp.bfloat16),
        w2=_block_diag(w2f, w_spatial, wout, stride).astype(jnp.bfloat16),
        b1=_tile_row(p["r_b1"], w_spatial).astype(jnp.float32),
        taps=jnp.tile(taps, (1, w_spatial)).astype(jnp.float32),
        shifts_out=jnp.concatenate(
            [_tile_row(b3c, wout), _tile_row(b2c, wout)], axis=0).astype(jnp.float32),
    )
    return prep, wout, ch


# --------------------------------------------------------------------------
# pallas_call wrappers
# --------------------------------------------------------------------------
_COMPILER_PARAMS = pltpu.CompilerParams(
    dimension_semantics=("parallel",),
    # Raised from 32 MiB (v5e/v6e have 128 MiB VMEM); 48 MiB still leaves
    # headroom on v7x's 64 MiB per TensorCore.
    vmem_limit_bytes=48 * 1024 * 1024)


def _bcast_spec(a):
    nd = a.ndim
    return pl.BlockSpec(a.shape, lambda i, _nd=nd: (0,) * _nd)


def _pick_batch_block(n, per_image_bytes, budget_bytes=8 << 20):
    """Largest divisor of N that fits the VMEM budget while keeping >= 2 grid
    steps when possible (so both v7x TensorCores get work)."""
    cap = max(1, int(budget_bytes // max(int(per_image_bytes), 1)))
    divisors = [d for d in range(1, n + 1) if n % d == 0 and d <= cap]
    if not divisors:
        return 1
    two_step = [d for d in divisors if n // d >= 2]
    return max(two_step) if two_step else max(divisors)


def _identity_call(x_sc, x_res, prep, *, cb, nb):
    n, h, wcb = x_res.shape
    in_arrs = (x_sc, x_res, prep["w1"], prep["w3"], prep["taps"], prep["shifts"])
    in_specs = [pl.BlockSpec((nb, h, wcb), lambda i: (i, 0, 0)),
                pl.BlockSpec((nb, h, wcb), lambda i: (i, 0, 0))]
    in_specs += [_bcast_spec(a) for a in in_arrs[2:]]
    return pl.pallas_call(
        functools.partial(_identity_kernel, cb=cb),
        out_shape=jax.ShapeDtypeStruct((2, n, h, wcb), jnp.bfloat16),
        grid=(n // nb,),
        in_specs=in_specs,
        out_specs=pl.BlockSpec((2, nb, h, wcb), lambda i: (0, i, 0, 0)),
        scratch_shapes=[pltpu.VMEM((nb, h + 2, wcb), jnp.float32),
                        pltpu.VMEM((nb, h + 2, wcb), jnp.float32),
                        pltpu.VMEM((nb, h + 2, wcb), jnp.float32)],
        compiler_params=_COMPILER_PARAMS,
    )(*in_arrs)


def _down_call(xf, prep, *, c_in, stride, hout, wch, nb):
    n, h, wc = xf.shape
    in_arrs = (xf, prep["w1"], prep["b1"], prep["taps"],
               prep["w3"], prep["w2"], prep["shifts_out"])
    in_specs = [pl.BlockSpec((nb, h, wc), lambda i: (i, 0, 0))]
    in_specs += [_bcast_spec(a) for a in in_arrs[1:]]
    return pl.pallas_call(
        functools.partial(_down_kernel, c_in=c_in, stride=stride),
        out_shape=jax.ShapeDtypeStruct((2, n, hout, wch), jnp.bfloat16),
        grid=(n // nb,),
        in_specs=in_specs,
        out_specs=pl.BlockSpec((2, nb, hout, wch), lambda i: (0, i, 0, 0)),
        scratch_shapes=[pltpu.VMEM((nb, h + 2, wc), jnp.float32),
                        pltpu.VMEM((nb, h + 2, wc), jnp.float32),
                        pltpu.VMEM((nb, h + 2, wc), jnp.float32),
                        pltpu.VMEM((nb, h, wc), jnp.float32)],
        compiler_params=_COMPILER_PARAMS,
    )(*in_arrs)


# --------------------------------------------------------------------------
# Pure-JAX reference (independent code path: explicit pad/concat/shuffle)
# --------------------------------------------------------------------------
def _ref_pw(x, w, scale, shift, relu):
    y = jnp.einsum("nhwc,cd->nhwd", x, w) * scale + shift
    return jnp.maximum(y, 0.0) if relu else y


def _ref_dw(x, k, scale, shift, stride):
    n, h, w, c = x.shape
    xp = jnp.pad(x, ((0, 0), (1, 1), (1, 1), (0, 0)))
    hout = (h - 1) // stride + 1
    wout = (w - 1) // stride + 1
    acc = jnp.zeros((n, hout, wout, c), jnp.float32)
    for dh in range(3):
        for dw in range(3):
            acc = acc + xp[:, dh:dh + stride * (hout - 1) + 1:stride,
                           dw:dw + stride * (wout - 1) + 1:stride, :] * k[dh, dw, :]
    return acc * scale + shift


def channel_shuffle_nhwc(y, groups):
    n, h, w, c = y.shape
    y = y.reshape(n, h, w, groups, c // groups)
    return jnp.transpose(y, (0, 1, 2, 4, 3)).reshape(n, h, w, c)


# --------------------------------------------------------------------------
# ShuffleUnit params + forward
# --------------------------------------------------------------------------
def init_shuffle_unit_params(key, in_channels, out_channels, stride):
    """Deterministic synthetic params; conv bias + eval-mode BN folded into
    per-channel (scale, shift)."""
    keys = iter(jax.random.split(key, 64))

    def nrm(shape, s=0.1):
        return s * jax.random.normal(next(keys), shape, jnp.float32)

    def bn_fold(conv_bias, c, eps=1e-5):
        gamma = 1.0 + nrm((c,))
        beta = nrm((c,))
        mean = nrm((c,))
        var = jnp.abs(jax.random.normal(next(keys), (c,), jnp.float32)) + 0.5
        scale = gamma / jnp.sqrt(var + eps)
        shift = scale * (conv_bias - mean) + beta
        return scale, shift

    p = {}
    if stride != 1 or in_channels != out_channels:
        c, ch = in_channels, out_channels // 2
        p["r_w1"] = nrm((c, c));    p["r_s1"], p["r_b1"] = bn_fold(nrm((c,)), c)
        p["r_k2"] = nrm((3, 3, c)); p["r_s2"], p["r_b2"] = bn_fold(nrm((c,)), c)
        p["r_w3"] = nrm((c, ch));   p["r_s3"], p["r_b3"] = bn_fold(nrm((ch,)), ch)
        p["s_k1"] = nrm((3, 3, c)); p["s_s1"], p["s_b1"] = bn_fold(nrm((c,)), c)
        p["s_w2"] = nrm((c, ch));   p["s_s2"], p["s_b2"] = bn_fold(nrm((ch,)), ch)
    else:
        cb = in_channels // 2
        p["r_w1"] = nrm((cb, cb));   p["r_s1"], p["r_b1"] = bn_fold(nrm((cb,)), cb)
        p["r_k2"] = nrm((3, 3, cb)); p["r_s2"], p["r_b2"] = bn_fold(nrm((cb,)), cb)
        p["r_w3"] = nrm((cb, cb));   p["r_s3"], p["r_b3"] = bn_fold(nrm((cb,)), cb)
    return p


def shuffle_unit_forward(x_nchw, params, in_channels, out_channels, stride,
                         use_pallas=True):
    x = jnp.transpose(x_nchw, (0, 2, 3, 1)).astype(jnp.float32)  # NCHW -> NHWC
    n, h, w, c = x.shape

    if use_pallas:
        # Kernel I/O is bf16 (roofline win); intermediates stay f32 in VMEM.
        if stride == 1 and in_channels == out_channels:
            cb = c // 2
            prep = _prepare_identity(params, w)
            # channel split + (W, C) -> lane flatten: pure layout plumbing.
            x_sc = x[..., :cb].reshape(n, h, w * cb).astype(jnp.bfloat16)
            x_res = x[..., cb:].reshape(n, h, w * cb).astype(jnp.bfloat16)
            nb = _pick_batch_block(n, 24 * h * w * c)
            y = _identity_call(x_sc, x_res, prep, cb=cb, nb=nb)
            hout, wout, ch = h, w, cb
        else:
            prep, wout, ch = _prepare_down(params, w, stride)
            hout = (h - 1) // stride + 1
            xf = x.reshape(n, h, w * c).astype(jnp.bfloat16)
            nb = _pick_batch_block(n, 24 * h * w * c)
            y = _down_call(xf, prep, c_in=c, stride=stride,
                           hout=hout, wch=wout * ch, nb=nb)
        # concat + channel_shuffle(groups=2) + NHWC->NCHW folded into one
        # transpose/reshape of the branch-major, lane-flattened kernel output:
        # out[:, 2i] = shortcut_i, out[:, 2i+1] = residual_i.
        y = y.reshape(2, n, hout, wout, ch)
        return jnp.transpose(y, (1, 4, 0, 2, 3)).reshape(n, 2 * ch, hout, wout)

    # --- reference path (mirrors the PyTorch module structure) ---
    if stride == 1 and in_channels == out_channels:
        split = in_channels // 2
        s = x[..., :split]
        res = x[..., split:]
        r = _ref_pw(res, params["r_w1"], params["r_s1"], params["r_b1"], True)
        r = _ref_dw(r, params["r_k2"], params["r_s2"], params["r_b2"], stride)
        r = _ref_pw(r, params["r_w3"], params["r_s3"], params["r_b3"], True)
    else:
        r = _ref_pw(x, params["r_w1"], params["r_s1"], params["r_b1"], True)
        r = _ref_dw(r, params["r_k2"], params["r_s2"], params["r_b2"], stride)
        r = _ref_pw(r, params["r_w3"], params["r_s3"], params["r_b3"], True)
        s = _ref_dw(x, params["s_k1"], params["s_s1"], params["s_b1"], stride)
        s = _ref_pw(s, params["s_w2"], params["s_s2"], params["s_b2"], True)
    y = jnp.concatenate([s, r], axis=-1)
    y = channel_shuffle_nhwc(y, 2)
    return jnp.transpose(y, (0, 3, 1, 2))


# --------------------------------------------------------------------------
# Demo / self-check
# --------------------------------------------------------------------------
if __name__ == "__main__":
    key = jax.random.PRNGKey(0)
    kx, kp1, kp2 = jax.random.split(key, 3)

    N, C, H, W = 2, 32, 16, 16
    x = jax.random.normal(kx, (N, C, H, W), jnp.float32)

    # Config A: stride=1, in == out (channel-split / identity-shortcut path)
    pA = init_shuffle_unit_params(kp1, C, C, 1)
    outA = shuffle_unit_forward(x, pA, C, C, 1, use_pallas=True)
    refA = shuffle_unit_forward(x, pA, C, C, 1, use_pallas=False)

    # Config B: stride=2, out = 2 * in (downsampling path)
    Cout = 64
    pB = init_shuffle_unit_params(kp2, C, Cout, 2)
    outB = shuffle_unit_forward(x, pB, C, Cout, 2, use_pallas=True)
    refB = shuffle_unit_forward(x, pB, C, Cout, 2, use_pallas=False)

    jax.block_until_ready((outA, outB))

    assert outA.shape == (N, C, H, W), outA.shape
    assert outB.shape == (N, Cout, H // 2, W // 2), outB.shape
    # kernel path uses bf16 I/O + bf16 MXU matmuls (f32 accumulation);
    # reference is pure f32.
    np.testing.assert_allclose(np.asarray(outA.astype(jnp.float32)),
                               np.asarray(refA), rtol=3e-2, atol=3e-2)
    np.testing.assert_allclose(np.asarray(outB.astype(jnp.float32)),
                               np.asarray(refB), rtol=3e-2, atol=3e-2)

    print("KERNEL_OK")
</pallas_src>

<mosaic_0001>
module attributes {stable_mosaic.version = 11 : i64} {
  func.func @_identity_kernel(%arg0: i32, %arg1: memref<1x16x256xbf16, #tpu.memory_space<vmem>>, %arg2: memref<1x16x256xbf16, #tpu.memory_space<vmem>>, %arg3: memref<256x256xbf16, #tpu.memory_space<vmem>>, %arg4: memref<256x256xbf16, #tpu.memory_space<vmem>>, %arg5: memref<9x256xf32, #tpu.memory_space<vmem>>, %arg6: memref<2x256xf32, #tpu.memory_space<vmem>>, %arg7: memref<2x1x16x256xbf16, #tpu.memory_space<vmem>>, %arg8: memref<1x18x256xf32, #tpu.memory_space<vmem>>, %arg9: memref<1x18x256xf32, #tpu.memory_space<vmem>>, %arg10: memref<1x18x256xf32, #tpu.memory_space<vmem>>) attributes {dimension_semantics = [#tpu.dimension_semantics<parallel>], iteration_bounds = array<i64: 2>, scalar_prefetch = 0 : i64, scratch_operands = 3 : i64, tpu.core_type = #tpu.core_type<tc>, window_params = [{transform_indices = @transform_0, window_bounds = array<i64: 1, 16, 256>}, {transform_indices = @transform_1, window_bounds = array<i64: 1, 16, 256>}, {pipeline_mode = #tpu.pipeline_mode<synchronous>, transform_indices = @transform_2, window_bounds = array<i64: 256, 256>}, {pipeline_mode = #tpu.pipeline_mode<synchronous>, transform_indices = @transform_3, window_bounds = array<i64: 256, 256>}, {pipeline_mode = #tpu.pipeline_mode<synchronous>, transform_indices = @transform_4, window_bounds = array<i64: 9, 256>}, {pipeline_mode = #tpu.pipeline_mode<synchronous>, transform_indices = @transform_5, window_bounds = array<i64: 2, 256>}, {transform_indices = @transform_6, window_bounds = array<i64: 2, 1, 16, 256>}]} {
    %c0 = arith.constant 0 : index
    %c0_0 = arith.constant 0 : index
    %c0_1 = arith.constant 0 : index
    %0 = vector.load %arg1[%c0, %c0_0, %c0_1] : memref<1x16x256xbf16, #tpu.memory_space<vmem>>, vector<1x16x256xbf16>
    %c0_2 = arith.constant 0 : index
    %c0_3 = arith.constant 0 : index
    %c0_4 = arith.constant 0 : index
    %c0_5 = arith.constant 0 : index
    %1 = vector.load %arg7[%c0_2, %c0_3, %c0_4, %c0_5] : memref<2x1x16x256xbf16, #tpu.memory_space<vmem>>, vector<1x1x16x256xbf16>
    %2 = vector.shape_cast %1 : vector<1x1x16x256xbf16> to vector<1x16x256xbf16>
    %3 = vector.shape_cast %0 : vector<1x16x256xbf16> to vector<1x1x16x256xbf16>
    tpu.vector_store %arg7[%c0_2, %c0_3, %c0_4, %c0_5], %3 {strides = array<i32>} : memref<2x1x16x256xbf16, #tpu.memory_space<vmem>>, vector<1x1x16x256xbf16>,
    %c0_6 = arith.constant 0 : index
    %c0_7 = arith.constant 0 : index
    %c0_8 = arith.constant 0 : index
    %4 = vector.load %arg2[%c0_6, %c0_7, %c0_8] : memref<1x16x256xbf16, #tpu.memory_space<vmem>>, vector<1x16x256xbf16>
    %5 = vector.shape_cast %4 : vector<1x16x256xbf16> to vector<16x256xbf16>
    %c0_9 = arith.constant 0 : index
    %c0_10 = arith.constant 0 : index
    %6 = vector.load %arg3[%c0_9, %c0_10] : memref<256x256xbf16, #tpu.memory_space<vmem>>, vector<256x256xbf16>
    %cst = arith.constant dense<0.000000e+00> : vector<16x256xf32>
    %7 = tpu.matmul %5, %6, %cst {dimension_numbers = #tpu.dot_dimension_numbers<[1], [0], [0], [1], [0, 0, 1, 1], [], []>} : vector<16x256xbf16>, vector<256x256xbf16>, vector<16x256xf32> -> vector<16x256xf32>
    %c0_11 = arith.constant 0 : index
    %c0_12 = arith.constant 0 : index
    %8 = vector.load %arg6[%c0_11, %c0_12] : memref<2x256xf32, #tpu.memory_space<vmem>>, vector<1x256xf32>
    %9 = vector.broadcast %8 : vector<1x256xf32> to vector<16x256xf32>
    %10 = arith.addf %7, %9 : vector<16x256xf32>
    %cst_13 = arith.constant 0.000000e+00 : f32
    %11 = vector.broadcast %cst_13 : f32 to vector<16x256xf32>
    %12 = arith.maximumf %10, %11 : vector<16x256xf32>
    %13 = vector.shape_cast %12 : vector<16x256xf32> to vector<1x16x256xf32>
    %cst_14 = arith.constant 0.000000e+00 : f32
    %14 = vector.broadcast %cst_14 : f32 to vector<1x1x256xf32>
    %c0_15 = arith.constant 0 : index
    %c0_16 = arith.constant 0 : index
    %c0_17 = arith.constant 0 : index
    %15 = vector.load %arg8[%c0_15, %c0_16, %c0_17] : memref<1x18x256xf32, #tpu.memory_space<vmem>>, vector<1x1x256xf32>
    tpu.vector_store %arg8[%c0_15, %c0_16, %c0_17], %14 {strides = array<i32>} : memref<1x18x256xf32, #tpu.memory_space<vmem>>, vector<1x1x256xf32>,
    %c0_18 = arith.constant 0 : index
    %c17 = arith.constant 17 : index
    %c0_19 = arith.constant 0 : index
    %16 = vector.load %arg8[%c0_18, %c17, %c0_19] : memref<1x18x256xf32, #tpu.memory_space<vmem>>, vector<1x1x256xf32>
    tpu.vector_store %arg8[%c0_18, %c17, %c0_19], %14 {strides = array<i32>} : memref<1x18x256xf32, #tpu.memory_space<vmem>>, vector<1x1x256xf32>,
    %c0_20 = arith.constant 0 : index
    %c1 = arith.constant 1 : index
    %c0_21 = arith.constant 0 : index
    %17 = vector.load %arg8[%c0_20, %c1, %c0_21] : memref<1x18x256xf32, #tpu.memory_space<vmem>>, vector<1x16x256xf32>
    tpu.vector_store %arg8[%c0_20, %c1, %c0_21], %13 {strides = array<i32>} : memref<1x18x256xf32, #tpu.memory_space<vmem>>, vector<1x16x256xf32>,
    %c0_22 = arith.constant 0 : index
    %c0_23 = arith.constant 0 : index
    %c0_24 = arith.constant 0 : index
    %18 = vector.load %arg8[%c0_22, %c0_23, %c0_24] : memref<1x18x256xf32, #tpu.memory_space<vmem>>, vector<1x18x256xf32>
    %19 = tpu.iota {dimensions = array<i32: 2>} : vector<1x18x256xi32>
    %c16_i32 = arith.constant 16 : i32
    %20 = vector.broadcast %c16_i32 : i32 to vector<1x18x256xi32>
    %21 = arith.cmpi sge, %19, %20 : vector<1x18x256xi32>
    %c16_i32_25 = arith.constant 16 : i32
    %22 = tpu.dynamic_rotate %18 by %c16_i32_25 dim 2 : vector<1x18x256xf32>, i32 -> vector<1x18x256xf32>
    %cst_26 = arith.constant 0.000000e+00 : f32
    %23 = vector.broadcast %cst_26 : f32 to vector<1x18x256xf32>
    %24 = arith.select %21, %22, %23 : vector<1x18x256xi1>, vector<1x18x256xf32>
    %c0_27 = arith.constant 0 : index
    %c0_28 = arith.constant 0 : index
    %c0_29 = arith.constant 0 : index
    %25 = vector.load %arg9[%c0_27, %c0_28, %c0_29] : memref<1x18x256xf32, #tpu.memory_space<vmem>>, vector<1x18x256xf32>
    tpu.vector_store %arg9[%c0_27, %c0_28, %c0_29], %24 {strides = array<i32>} : memref<1x18x256xf32, #tpu.memory_space<vmem>>, vector<1x18x256xf32>,
    %c240_i32 = arith.constant 240 : i32
    %26 = vector.broadcast %c240_i32 : i32 to vector<1x18x256xi32>
    %27 = arith.cmpi slt, %19, %26 : vector<1x18x256xi32>
    %c240_i32_30 = arith.constant 240 : i32
    %28 = tpu.dynamic_rotate %18 by %c240_i32_30 dim 2 : vector<1x18x256xf32>, i32 -> vector<1x18x256xf32>
    %cst_31 = arith.constant 0.000000e+00 : f32
    %29 = vector.broadcast %cst_31 : f32 to vector<1x18x256xf32>
    %30 = arith.select %27, %28, %29 : vector<1x18x256xi1>, vector<1x18x256xf32>
    %c0_32 = arith.constant 0 : index
    %c0_33 = arith.constant 0 : index
    %c0_34 = arith.constant 0 : index
    %31 = vector.load %arg10[%c0_32, %c0_33, %c0_34] : memref<1x18x256xf32, #tpu.memory_space<vmem>>, vector<1x18x256xf32>
    tpu.vector_store %arg10[%c0_32, %c0_33, %c0_34], %30 {strides = array<i32>} : memref<1x18x256xf32, #tpu.memory_space<vmem>>, vector<1x18x256xf32>,
    %c0_35 = arith.constant 0 : index
    %c0_36 = arith.constant 0 : index
    %32 = vector.load %arg5[%c0_35, %c0_36] : memref<9x256xf32, #tpu.memory_space<vmem>>, vector<1x256xf32>
    %c0_37 = arith.constant 0 : index
    %c0_38 = arith.constant 0 : index
    %c0_39 = arith.constant 0 : index
    %33 = vector.load %arg9[%c0_37, %c0_38, %c0_39] : memref<1x18x256xf32, #tpu.memory_space<vmem>>, vector<1x16x256xf32>
    %34 = vector.shape_cast %32 : vector<1x256xf32> to vector<1x1x256xf32>
    %35 = vector.broadcast %34 : vector<1x1x256xf32> to vector<1x16x256xf32>
    %36 = arith.mulf %33, %35 : vector<1x16x256xf32>
    %c1_40 = arith.constant 1 : index
    %c0_41 = arith.constant 0 : index
    %37 = vector.load %arg5[%c1_40, %c0_41] : memref<9x256xf32, #tpu.memory_space<vmem>>, vector<1x256xf32>
    %c0_42 = arith.constant 0 : index
    %c0_43 = arith.constant 0 : index
    %c0_44 = arith.constant 0 : index
    %38 = vector.load %arg8[%c0_42, %c0_43, %c0_44] : memref<1x18x256xf32, #tpu.memory_space<vmem>>, vector<1x16x256xf32>
    %39 = vector.shape_cast %37 : vector<1x256xf32> to vector<1x1x256xf32>
    %40 = vector.broadcast %39 : vector<1x1x256xf32> to vector<1x16x256xf32>
    %41 = arith.mulf %38, %40 : vector<1x16x256xf32>
    %42 = arith.addf %36, %41 : vector<1x16x256xf32>
    %c2 = arith.constant 2 : index
    %c0_45 = arith.constant 0 : index
    %43 = vector.load %arg5[%c2, %c0_45] : memref<9x256xf32, #tpu.memory_space<vmem>>, vector<1x256xf32>
    %c0_46 = arith.constant 0 : index
    %c0_47 = arith.constant 0 : index
    %c0_48 = arith.constant 0 : index
    %44 = vector.load %arg10[%c0_46, %c0_47, %c0_48] : memref<1x18x256xf32, #tpu.memory_space<vmem>>, vector<1x16x256xf32>
    %45 = vector.shape_cast %43 : vector<1x256xf32> to vector<1x1x256xf32>
    %46 = vector.broadcast %45 : vector<1x1x256xf32> to vector<1x16x256xf32>
    %47 = arith.mulf %44, %46 : vector<1x16x256xf32>
    %48 = arith.addf %42, %47 : vector<1x16x256xf32>
    %c3 = arith.constant 3 : index
    %c0_49 = arith.constant 0 : index
    %49 = vector.load %arg5[%c3, %c0_49] : memref<9x256xf32, #tpu.memory_space<vmem>>, vector<1x256xf32>
    %c0_50 = arith.constant 0 : index
    %c1_51 = arith.constant 1 : index
    %c0_52 = arith.constant 0 : index
    %50 = vector.load %arg9[%c0_50, %c1_51, %c0_52] : memref<1x18x256xf32, #tpu.memory_space<vmem>>, vector<1x16x256xf32>
    %51 = vector.shape_cast %49 : vector<1x256xf32> to vector<1x1x256xf32>
    %52 = vector.broadcast %51 : vector<1x1x256xf32> to vector<1x16x256xf32>
    %53 = arith.mulf %50, %52 : vector<1x16x256xf32>
    %54 = arith.addf %48, %53 : vector<1x16x256xf32>
    %c4 = arith.constant 4 : index
    %c0_53 = arith.constant 0 : index
    %55 = vector.load %arg5[%c4, %c0_53] : memref<9x256xf32, #tpu.memory_space<vmem>>, vector<1x256xf32>
    %c0_54 = arith.constant 0 : index
    %c1_55 = arith.constant 1 : index
    %c0_56 = arith.constant 0 : index
    %56 = vector.load %arg8[%c0_54, %c1_55, %c0_56] : memref<1x18x256xf32, #tpu.memory_space<vmem>>, vector<1x16x256xf32>
    %57 = vector.shape_cast %55 : vector<1x256xf32> to vector<1x1x256xf32>
    %58 = vector.broadcast %57 : vector<1x1x256xf32> to vector<1x16x256xf32>
    %59 = arith.mulf %56, %58 : vector<1x16x256xf32>
    %60 = arith.addf %54, %59 : vector<1x16x256xf32>
    %c5 = arith.constant 5 : index
    %c0_57 = arith.constant 0 : index
    %61 = vector.load %arg5[%c5, %c0_57] : memref<9x256xf32, #tpu.memory_space<vmem>>, vector<1x256xf32>
    %c0_58 = arith.constant 0 : index
    %c1_59 = arith.constant 1 : index
    %c0_60 = arith.constant 0 : index
    %62 = vector.load %arg10[%c0_58, %c1_59, %c0_60] : memref<1x18x256xf32, #tpu.memory_space<vmem>>, vector<1x16x256xf32>
    %63 = vector.shape_cast %61 : vector<1x256xf32> to vector<1x1x256xf32>
    %64 = vector.broadcast %63 : vector<1x1x256xf32> to vector<1x16x256xf32>
    %65 = arith.mulf %62, %64 : vector<1x16x256xf32>
    %66 = arith.addf %60, %65 : vector<1x16x256xf32>
    %c6 = arith.constant 6 : index
    %c0_61 = arith.constant 0 : index
    %67 = vector.load %arg5[%c6, %c0_61] : memref<9x256xf32, #tpu.memory_space<vmem>>, vector<1x256xf32>
    %c0_62 = arith.constant 0 : index
    %c2_63 = arith.constant 2 : index
    %c0_64 = arith.constant 0 : index
    %68 = vector.load %arg9[%c0_62, %c2_63, %c0_64] : memref<1x18x256xf32, #tpu.memory_space<vmem>>, vector<1x16x256xf32>
    %69 = vector.shape_cast %67 : vector<1x256xf32> to vector<1x1x256xf32>
    %70 = vector.broadcast %69 : vector<1x1x256xf32> to vector<1x16x256xf32>
    %71 = arith.mulf %68, %70 : vector<1x16x256xf32>
    %72 = arith.addf %66, %71 : vector<1x16x256xf32>
    %c7 = arith.constant 7 : index
    %c0_65 = arith.constant 0 : index
    %73 = vector.load %arg5[%c7, %c0_65] : memref<9x256xf32, #tpu.memory_space<vmem>>, vector<1x256xf32>
    %c0_66 = arith.constant 0 : index
    %c2_67 = arith.constant 2 : index
    %c0_68 = arith.constant 0 : index
    %74 = vector.load %arg8[%c0_66, %c2_67, %c0_68] : memref<1x18x256xf32, #tpu.memory_space<vmem>>, vector<1x16x256xf32>
    %75 = vector.shape_cast %73 : vector<1x256xf32> to vector<1x1x256xf32>
    %76 = vector.broadcast %75 : vector<1x1x256xf32> to vector<1x16x256xf32>
    %77 = arith.mulf %74, %76 : vector<1x16x256xf32>
    %78 = arith.addf %72, %77 : vector<1x16x256xf32>
    %c8 = arith.constant 8 : index
    %c0_69 = arith.constant 0 : index
    %79 = vector.load %arg5[%c8, %c0_69] : memref<9x256xf32, #tpu.memory_space<vmem>>, vector<1x256xf32>
    %c0_70 = arith.constant 0 : index
    %c2_71 = arith.constant 2 : index
    %c0_72 = arith.constant 0 : index
    %80 = vector.load %arg10[%c0_70, %c2_71, %c0_72] : memref<1x18x256xf32, #tpu.memory_space<vmem>>, vector<1x16x256xf32>
    %81 = vector.shape_cast %79 : vector<1x256xf32> to vector<1x1x256xf32>
    %82 = vector.broadcast %81 : vector<1x1x256xf32> to vector<1x16x256xf32>
    %83 = arith.mulf %80, %82 : vector<1x16x256xf32>
    %84 = arith.addf %78, %83 : vector<1x16x256xf32>
    %85 = vector.shape_cast %84 : vector<1x16x256xf32> to vector<16x256xf32>
    %86 = arith.truncf %85 : vector<16x256xf32> to vector<16x256xbf16>
    %c0_73 = arith.constant 0 : index
    %c0_74 = arith.constant 0 : index
    %87 = vector.load %arg4[%c0_73, %c0_74] : memref<256x256xbf16, #tpu.memory_space<vmem>>, vector<256x256xbf16>
    %cst_75 = arith.constant dense<0.000000e+00> : vector<16x256xf32>
    %88 = tpu.matmul %86, %87, %cst_75 {dimension_numbers = #tpu.dot_dimension_numbers<[1], [0], [0], [1], [0, 0, 1, 1], [], []>} : vector<16x256xbf16>, vector<256x256xbf16>, vector<16x256xf32> -> vector<16x256xf32>
    %c1_76 = arith.constant 1 : index
    %c0_77 = arith.constant 0 : index
    %89 = vector.load %arg6[%c1_76, %c0_77] : memref<2x256xf32, #tpu.memory_space<vmem>>, vector<1x256xf32>
    %90 = vector.broadcast %89 : vector<1x256xf32> to vector<16x256xf32>
    %91 = arith.addf %88, %90 : vector<16x256xf32>
    %cst_78 = arith.constant 0.000000e+00 : f32
    %92 = vector.broadcast %cst_78 : f32 to vector<16x256xf32>
    %93 = arith.maximumf %91, %92 : vector<16x256xf32>
    %94 = vector.shape_cast %93 : vector<16x256xf32> to vector<1x16x256xf32>
    %95 = arith.truncf %94 : vector<1x16x256xf32> to vector<1x16x256xbf16>
    %c1_79 = arith.constant 1 : index
    %c0_80 = arith.constant 0 : index
    %c0_81 = arith.constant 0 : index
    %c0_82 = arith.constant 0 : index
    %96 = vector.load %arg7[%c1_79, %c0_80, %c0_81, %c0_82] : memref<2x1x16x256xbf16, #tpu.memory_space<vmem>>, vector<1x1x16x256xbf16>
    %97 = vector.shape_cast %96 : vector<1x1x16x256xbf16> to vector<1x16x256xbf16>
    %98 = vector.shape_cast %95 : vector<1x16x256xbf16> to vector<1x1x16x256xbf16>
    tpu.vector_store %arg7[%c1_79, %c0_80, %c0_81, %c0_82], %98 {strides = array<i32>} : memref<2x1x16x256xbf16, #tpu.memory_space<vmem>>, vector<1x1x16x256xbf16>,
    return
  }
  func.func @transform_0(%arg0: i32) -> (i32, i32, i32) {
    %c0_i32 = arith.constant 0 : i32
    %c0_i32_0 = arith.constant 0 : i32
    %c0_i32_1 = arith.constant 0 : i32
    return %arg0, %c0_i32, %c0_i32_0 : i32, i32, i32
  }
  func.func @transform_1(%arg0: i32) -> (i32, i32, i32) {
    %c0_i32 = arith.constant 0 : i32
    %c0_i32_0 = arith.constant 0 : i32
    %c0_i32_1 = arith.constant 0 : i32
    return %arg0, %c0_i32, %c0_i32_0 : i32, i32, i32
  }
  func.func @transform_2(%arg0: i32) -> (i32, i32) {
    %c0_i32 = arith.constant 0 : i32
    %c0_i32_0 = arith.constant 0 : i32
    %c0_i32_1 = arith.constant 0 : i32
    return %c0_i32, %c0_i32_0 : i32, i32
  }
  func.func @transform_3(%arg0: i32) -> (i32, i32) {
    %c0_i32 = arith.constant 0 : i32
    %c0_i32_0 = arith.constant 0 : i32
    %c0_i32_1 = arith.constant 0 : i32
    return %c0_i32, %c0_i32_0 : i32, i32
  }
  func.func @transform_4(%arg0: i32) -> (i32, i32) {
    %c0_i32 = arith.constant 0 : i32
    %c0_i32_0 = arith.constant 0 : i32
    %c0_i32_1 = arith.constant 0 : i32
    return %c0_i32, %c0_i32_0 : i32, i32
  }
  func.func @transform_5(%arg0: i32) -> (i32, i32) {
    %c0_i32 = arith.constant 0 : i32
    %c0_i32_0 = arith.constant 0 : i32
    %c0_i32_1 = arith.constant 0 : i32
    return %c0_i32, %c0_i32_0 : i32, i32
  }
  func.func @transform_6(%arg0: i32) -> (i32, i32, i32, i32) {
    %c0_i32 = arith.constant 0 : i32
    %c0_i32_0 = arith.constant 0 : i32
    %c0_i32_1 = arith.constant 0 : i32
    %c0_i32_2 = arith.constant 0 : i32
    return %c0_i32, %arg0, %c0_i32_0, %c0_i32_1 : i32, i32, i32, i32
  }
}

</mosaic_0001>

<llo_original>
// kernel: tpu_custom_call.1
$region0: #{tpu_custom_call.1}
  #allocation0 [shape = 'u32[]', space=smem, size = 0x4, offset = 0x4, fixed_abs, tag = 'smem constant byte address 0x4 - core index']
  #allocation1 [shape = 'u32[144,128]{1,0:T(1,128)}', space=vmem, size = 0x12000, scoped, tag = 'internal scratch']
  #allocation2 [shape = 'f32[1,18,256]{2,1,0:T(8,128)}', space=vmem, size = 0x6000, scoped, tag = 'scratch operand']
  #allocation3 [shape = 'f32[1,18,256]{2,1,0:T(8,128)}', space=vmem, size = 0x6000, scoped, tag = 'scratch operand']
  #allocation4 [shape = 'f32[1,18,256]{2,1,0:T(8,128)}', space=vmem, size = 0x6000, scoped, tag = 'scratch operand']
  #allocation15 [shape = 's32[]', space=sflag, size = 0x4, offset = 0, fixed_abs, tag = 'sflag constant byte address 0x0 - dummy sync flag']
  %s0 = inlined_call_operand.hbm [shape: bf16[2,16,256], index: 0, kind: input, shape index: {}]
  %s1 = inlined_call_operand.hbm [shape: bf16[2,16,256], index: 1, kind: input, shape index: {}]
  %s2 = inlined_call_operand.hbm [shape: bf16[256,256], index: 2, kind: input, shape index: {}]
  %s3 = inlined_call_operand.hbm [shape: bf16[256,256], index: 3, kind: input, shape index: {}]
  %s4 = inlined_call_operand.hbm [shape: f32[9,256], index: 4, kind: input, shape index: {}]
  %s5 = inlined_call_operand.vmem [shape: f32[2,256], index: 5, kind: input, shape index: {}]
  %s6 = inlined_call_operand.hbm [shape: bf16[2,2,16,256], index: 6, kind: output, shape index: {}]
  %s7 = sld [smem:[#allocation0]]
  $region77: #{tpu_custom_call.1} parent=0
    _
  %s9 = ssub.s32 1, %s7
  %s10 = scalar_select 0, %s9, %s7
  $region1: #{tpu_custom_call.1} parent=0
    #allocation5 [shape = 'u8[16384]{0}', space=vmem, size = 0x4000, scoped, tag = 'input window, operand 0']
    #allocation6 [shape = 's32[2]{0}', space=sflag, size = 0x8, scoped, tag = 'scoped memory for tpu_custom_call.1']
    #allocation7 [shape = 's32[2]{0}', space=sflag, size = 0x8, scoped, tag = 'scoped memory for tpu_custom_call.1']
    #allocation8 [shape = 'u8[16384]{0}', space=vmem, size = 0x4000, scoped, tag = 'input window, operand 1']
    #allocation9 [shape = 's32[2]{0}', space=sflag, size = 0x8, scoped, tag = 'scoped memory for tpu_custom_call.1']
    #allocation10 [shape = 'u8[131072]{0}', space=vmem, size = 0x20000, scoped, tag = 'input window, operand 2, single buffered']
    #allocation11 [shape = 'u8[131072]{0}', space=vmem, size = 0x20000, scoped, tag = 'input window, operand 3, single buffered']
    #allocation12 [shape = 's32[1]{0}', space=sflag, size = 0x4, scoped, tag = 'scoped memory for tpu_custom_call.1']
    #allocation13 [shape = 'u8[16384]{0}', space=vmem, size = 0x4000, scoped, tag = 'input window, operand 4, single buffered']
    #allocation14 [shape = 'u8[32768]{0}', space=vmem, size = 0x8000, scoped, tag = 'output window, operand 0']
    %11 = vsyncpa [#allocation6], 0
    %s12 = scalar_lea.sflag [#allocation6], 1
    %13 = vsyncpa %s12, 0
    %14 = vsyncpa [#allocation9], 0
    %s15 = scalar_lea.sflag [#allocation9], 1
    %16 = vsyncpa %s15, 0
    %17 = vsyncpa [#allocation12], 0
    %18 = vsyncpa [#allocation7], 0
    %s19 = scalar_lea.sflag [#allocation7], 1
    %20 = vsyncpa %s19, 0
    loop: start=0, step=1, limit=4
    $region2: #{tpu_custom_call.1} parent=1 // loop_pre_header
      _
    $region3: #{tpu_custom_call.1} parent=1 // loop_header
      %s22 = sphi 0, %s26
      %p23 = scmp.ge.s32.totalorder %s22, 4
      %s32 = sphi 0, %s34
      %s35 = sphi 0, %s32
      %s36 = sphi 0, %s35
      %s52 = sphi 0, %s36
      %s58 = sphi 0, %s60
      %s61 = sphi 0, %s58
      %s62 = sphi 0, %s61
      %s78 = sphi 0, %s62
      %s82 = sphi 0, %s82
      %s84 = sphi 0, %s82
      %s85 = sphi 0, %s84
      %s99 = sphi 0, %s85
      %s103 = sphi 0, %s103
      %s105 = sphi 0, %s103
      %s106 = sphi 0, %s105
      %s120 = sphi 0, %s106
      %s124 = sphi 0, %s124
      %s126 = sphi 0, %s124
      %s127 = sphi 0, %s126
      %s141 = sphi 0, %s127
      %s145 = sphi 0, %s145
      %s147 = sphi 0, %s145
      %s148 = sphi 0, %s147
      %s162 = sphi 0, %s148
      %s168 = sphi 0, %s170
      %s171 = sphi 0, %s168
      %s172 = sphi 0, %s171
      %s188 = sphi 0, %s172
    $region4: #{tpu_custom_call.1} parent=1 // loop_header_branch
      %25 = sbr.rel (%p23) target = $region8
    $region5: #{tpu_custom_call.1} parent=1 // loop_body
      %s27 = ssub.s32 %s22, 1
      %s28 = ssub.s32 %s22, 2
      %s29 = sadd.s32 %s22, 1
      %s30 = ssub.s32 %s22, %s29
      %p31 = scmp.eq.s32.totalorder %s30, 0
      %s33 = sadd.s32 %s32, 1
      %s34 = scalar_select %p31, %s32, %s33
      %p37 = pneg %p31
      %p38 = scmp.eq.s32.totalorder %s22, 1
      %p39 = por %p37, %p38
      %p40 = scmp.ne.s32.totalorder %s32, %s35
      %p41 = scmp.eq.s32.totalorder %s22, 0
      %p42 = por %p40, %p41
      %p43 = scmp.ne.s32.totalorder %s32, %s35
      %p44 = scmp.eq.s32.totalorder %s27, 1
      %p45 = por %p43, %p44
      %p46 = scmp.ne.s32.totalorder %s35, %s36
      %p47 = scmp.eq.s32.totalorder %s27, 0
      %p48 = por %p46, %p47
      %p49 = scmp.ne.s32.totalorder %s35, %s36
      %p50 = scmp.eq.s32.totalorder %s28, 1
      %p51 = por %p49, %p50
      %p53 = scmp.ne.s32.totalorder %s36, %s52
      %p54 = scmp.eq.s32.totalorder %s28, 0
      %p55 = por %p53, %p54
      %s56 = ssub.s32 %s22, %s29
      %p57 = scmp.eq.s32.totalorder %s56, 0
      %s59 = sadd.s32 %s58, 1
      %s60 = scalar_select %p57, %s58, %s59
      %p63 = pneg %p57
      %p64 = scmp.eq.s32.totalorder %s22, 1
      %p65 = por %p63, %p64
      %p66 = scmp.ne.s32.totalorder %s58, %s61
      %p67 = scmp.eq.s32.totalorder %s22, 0
      %p68 = por %p66, %p67
      %p69 = scmp.ne.s32.totalorder %s58, %s61
      %p70 = scmp.eq.s32.totalorder %s27, 1
      %p71 = por %p69, %p70
      %p72 = scmp.ne.s32.totalorder %s61, %s62
      %p73 = scmp.eq.s32.totalorder %s27, 0
      %p74 = por %p72, %p73
      %p75 = scmp.ne.s32.totalorder %s61, %s62
      %p76 = scmp.eq.s32.totalorder %s28, 1
      %p77 = por %p75, %p76
      %p79 = scmp.ne.s32.totalorder %s62, %s78
      %p80 = scmp.eq.s32.totalorder %s28, 0
      %p81 = por %p79, %p80
      %s83 = sadd.s32 %s82, 1
      %p86 = scmp.eq.s32.totalorder %s22, 1
      %p87 = scmp.ne.s32.totalorder %s82, %s84
      %p88 = scmp.eq.s32.totalorder %s22, 0
      %p89 = por %p87, %p88
      %p90 = scmp.ne.s32.totalorder %s82, %s84
      %p91 = scmp.eq.s32.totalorder %s27, 1
      %p92 = por %p90, %p91
      %p93 = scmp.ne.s32.totalorder %s84, %s85
      %p94 = scmp.eq.s32.totalorder %s27, 0
      %p95 = por %p93, %p94
      %p96 = scmp.ne.s32.totalorder %s84, %s85
      %p97 = scmp.eq.s32.totalorder %s28, 1
      %p98 = por %p96, %p97
      %p100 = scmp.ne.s32.totalorder %s85, %s99
      %p101 = scmp.eq.s32.totalorder %s28, 0
      %p102 = por %p100, %p101
      %s104 = sadd.s32 %s103, 1
      %p107 = scmp.eq.s32.totalorder %s22, 1
      %p108 = scmp.ne.s32.totalorder %s103, %s105
      %p109 = scmp.eq.s32.totalorder %s22, 0
      %p110 = por %p108, %p109
      %p111 = scmp.ne.s32.totalorder %s103, %s105
      %p112 = scmp.eq.s32.totalorder %s27, 1
      %p113 = por %p111, %p112
      %p114 = scmp.ne.s32.totalorder %s105, %s106
      %p115 = scmp.eq.s32.totalorder %s27, 0
      %p116 = por %p114, %p115
      %p117 = scmp.ne.s32.totalorder %s105, %s106
      %p118 = scmp.eq.s32.totalorder %s28, 1
      %p119 = por %p117, %p118
      %p121 = scmp.ne.s32.totalorder %s106, %s120
      %p122 = scmp.eq.s32.totalorder %s28, 0
      %p123 = por %p121, %p122
      %s125 = sadd.s32 %s124, 1
      %p128 = scmp.eq.s32.totalorder %s22, 1
      %p129 = scmp.ne.s32.totalorder %s124, %s126
      %p130 = scmp.eq.s32.totalorder %s22, 0
      %p131 = por %p129, %p130
      %p132 = scmp.ne.s32.totalorder %s124, %s126
      %p133 = scmp.eq.s32.totalorder %s27, 1
      %p134 = por %p132, %p133
      %p135 = scmp.ne.s32.totalorder %s126, %s127
      %p136 = scmp.eq.s32.totalorder %s27, 0
      %p137 = por %p135, %p136
      %p138 = scmp.ne.s32.totalorder %s126, %s127
      %p139 = scmp.eq.s32.totalorder %s28, 1
      %p140 = por %p138, %p139
      %p142 = scmp.ne.s32.totalorder %s127, %s141
      %p143 = scmp.eq.s32.totalorder %s28, 0
      %p144 = por %p142, %p143
      %s146 = sadd.s32 %s145, 1
      %p149 = scmp.eq.s32.totalorder %s22, 1
      %p150 = scmp.ne.s32.totalorder %s145, %s147
      %p151 = scmp.eq.s32.totalorder %s22, 0
      %p152 = por %p150, %p151
      %p153 = scmp.ne.s32.totalorder %s145, %s147
      %p154 = scmp.eq.s32.totalorder %s27, 1
      %p155 = por %p153, %p154
      %p156 = scmp.ne.s32.totalorder %s147, %s148
      %p157 = scmp.eq.s32.totalorder %s27, 0
      %p158 = por %p156, %p157
      %p159 = scmp.ne.s32.totalorder %s147, %s148
      %p160 = scmp.eq.s32.totalorder %s28, 1
      %p161 = por %p159, %p160
      %p163 = scmp.ne.s32.totalorder %s148, %s162
      %p164 = scmp.eq.s32.totalorder %s28, 0
      %p165 = por %p163, %p164
      %s166 = ssub.s32 %s22, %s29
      %p167 = scmp.eq.s32.totalorder %s166, 0
      %s169 = sadd.s32 %s168, 1
      %s170 = scalar_select %p167, %s168, %s169
      %p173 = pneg %p167
      %p174 = scmp.eq.s32.totalorder %s22, 1
      %p175 = por %p173, %p174
      %p176 = scmp.ne.s32.totalorder %s168, %s171
      %p177 = scmp.eq.s32.totalorder %s22, 0
      %p178 = por %p176, %p177
      %p179 = scmp.ne.s32.totalorder %s168, %s171
      %p180 = scmp.eq.s32.totalorder %s27, 1
      %p181 = por %p179, %p180
      %p182 = scmp.ne.s32.totalorder %s171, %s172
      %p183 = scmp.eq.s32.totalorder %s27, 0
      %p184 = por %p182, %p183
      %p185 = scmp.ne.s32.totalorder %s171, %s172
      %p186 = scmp.eq.s32.totalorder %s28, 1
      %p187 = por %p185, %p186
      %p189 = scmp.ne.s32.totalorder %s172, %s188
      %p190 = scmp.eq.s32.totalorder %s28, 0
      %p191 = por %p189, %p190
      %p192 = scmp.le.s32.totalorder 1, %s22
      %p193 = scmp.lt.s32.totalorder %s22, 3
      %p194 = pnand %p192, %p193
      %p195 = pneg %p194
      // Predicated region
      $region9: #{tpu_custom_call.1} parent=5 // pred_check
        _
      $region10: #{tpu_custom_call.1} parent=5 // pred_check_branch
        %197 = sbr.rel (%p194) target = $region12
      $region11: #{tpu_custom_call.1} parent=5 // pred_region
        %s198 = ssub.s32 %s22, 1
        // Predicated region
        $region13: #{tpu_custom_call.1} parent=11 // pred_check
          %p199 = pneg %p95
        $region14: #{tpu_custom_call.1} parent=11 // pred_check_branch
          %201 = sbr.rel (%p199) target = $region16
        $region15: #{tpu_custom_call.1} parent=11 // pred_region
          %s203 = ssub.s32 4096, 4096
          %204 = vsyncadd [#allocation9], %s203
          %s205 = sshll.u32 [#allocation10], 4
          %s206 = int_to_ptr.vmem [resolvable:$true] %s205
          %211 = dma.hbm_to_vmem [thread:$0]  %s2, 4096, %s206, [#allocation9], 128, 128, 8
        $region16: #{tpu_custom_call.1} parent=11 // pred_fallthru
          _
        // Predicated region
        $region17: #{tpu_custom_call.1} parent=11 // pred_check
          %p212 = pneg %p116
        $region18: #{tpu_custom_call.1} parent=11 // pred_check_branch
          %214 = sbr.rel (%p212) target = $region20
        $region19: #{tpu_custom_call.1} parent=11 // pred_region
          %s216 = ssub.s32 4096, 4096
          %217 = vsyncadd [#allocation12], %s216
          %s218 = sshll.u32 [#allocation11], 4
          %s219 = int_to_ptr.vmem [resolvable:$true] %s218
          %224 = dma.hbm_to_vmem [thread:$0]  %s3, 4096, %s219, [#allocation12], 128, 128, 8
        $region20: #{tpu_custom_call.1} parent=11 // pred_fallthru
          _
        // Predicated region
        $region21: #{tpu_custom_call.1} parent=11 // pred_check
          %p225 = pneg %p137
        $region22: #{tpu_custom_call.1} parent=11 // pred_check_branch
          %227 = sbr.rel (%p225) target = $region24
        $region23: #{tpu_custom_call.1} parent=11 // pred_region
          %s229 = ssub.s32 512, 512
          %230 = vsyncadd [#allocation12], %s229
          %s231 = sshll.u32 [#allocation13], 4
          %s232 = int_to_ptr.vmem [resolvable:$true] %s231
          %237 = dma.hbm_to_vmem [thread:$0]  %s4, 512, %s232, [#allocation12], 256, 256, 16
        $region24: #{tpu_custom_call.1} parent=11 // pred_fallthru
          _
        // Predicated region
        $region25: #{tpu_custom_call.1} parent=11 // pred_check
          %p238 = pneg %p158
        $region26: #{tpu_custom_call.1} parent=11 // pred_check_branch
          %240 = sbr.rel (%p238) target = $region28
        $region27: #{tpu_custom_call.1} parent=11 // pred_region
          _
        $region28: #{tpu_custom_call.1} parent=11 // pred_fallthru
          _
      $region12: #{tpu_custom_call.1} parent=5 // pred_fallthru
        _
      %p241 = scmp.lt.s32.totalorder %s22, 2
      // Predicated region
      $region29: #{tpu_custom_call.1} parent=5 // pred_check
        %p242 = pneg %p241
      $region30: #{tpu_custom_call.1} parent=5 // pred_check_branch
        %244 = sbr.rel (%p242) target = $region32
      $region31: #{tpu_custom_call.1} parent=5 // pred_region
        // Predicated region
        $region33: #{tpu_custom_call.1} parent=31 // pred_check
          %p245 = pneg %p42
        $region34: #{tpu_custom_call.1} parent=31 // pred_check_branch
          %247 = sbr.rel (%p245) target = $region36
        $region35: #{tpu_custom_call.1} parent=31 // pred_region
          %s248 = sand.u32 %s32, 1
          %s249 = scalar_lea.sflag [#allocation6], %s248
          %s250 = sand.u32 %s32, 1
          %s251 = smul.addr %s250, 16
          %s252 = scalar_lea.vmem [#allocation5], %s251
          %s254 = ssub.s32 256, 256
          %255 = vsyncadd %s249, %s254
          %s256 = smul.addr %s22, 4
          %s257 = smul.addr %s256, 64
          %s258 = scalar_lea.hbm %s0, %s257
          %s259 = sshll.u32 %s252, 4
          %s260 = int_to_ptr.vmem [resolvable:$true] %s259
          %265 = dma.hbm_to_vmem [thread:$0]  %s258, 256, %s260, %s249, 128, 128, 8
        $region36: #{tpu_custom_call.1} parent=31 // pred_fallthru
          _
        // Predicated region
        $region37: #{tpu_custom_call.1} parent=31 // pred_check
          %p266 = pneg %p68
        $region38: #{tpu_custom_call.1} parent=31 // pred_check_branch
          %268 = sbr.rel (%p266) target = $region40
        $region39: #{tpu_custom_call.1} parent=31 // pred_region
          %s269 = sand.u32 %s22, 1
          %s270 = scalar_lea.sflag [#allocation9], %s269
          %s271 = sand.u32 %s58, 1
          %s272 = smul.addr %s271, 16
          %s273 = scalar_lea.vmem [#allocation8], %s272
          %s275 = ssub.s32 256, 256
          %276 = vsyncadd %s270, %s275
          %s277 = smul.addr %s22, 4
          %s278 = smul.addr %s277, 64
          %s279 = scalar_lea.hbm %s1, %s278
          %s280 = sshll.u32 %s273, 4
          %s281 = int_to_ptr.vmem [resolvable:$true] %s280
          %286 = dma.hbm_to_vmem [thread:$0]  %s279, 256, %s281, %s270, 128, 128, 8
        $region40: #{tpu_custom_call.1} parent=31 // pred_fallthru
          _
      $region32: #{tpu_custom_call.1} parent=5 // pred_fallthru
        _
      %p287 = scmp.le.s32.totalorder 1, %s22
      %p288 = scmp.lt.s32.totalorder %s22, 3
      %p289 = pnand %p287, %p288
      %p290 = pneg %p289
      // Predicated region
      $region41: #{tpu_custom_call.1} parent=5 // pred_check
        _
      $region42: #{tpu_custom_call.1} parent=5 // pred_check_branch
        %292 = sbr.rel (%p289) target = $region44
      $region43: #{tpu_custom_call.1} parent=5 // pred_region
        %s293 = ssub.s32 %s22, 1
        %s294 = sand.u32 %s35, 1
        %s295 = scalar_lea.sflag [#allocation6], %s294
        %s296 = sand.u32 %s35, 1
        %s297 = smul.addr %s296, 16
        %s298 = scalar_lea.vmem [#allocation5], %s297
        // Predicated region
        $region45: #{tpu_custom_call.1} parent=43 // pred_check
          %p299 = pneg %p48
        $region46: #{tpu_custom_call.1} parent=43 // pred_check_branch
          %301 = sbr.rel (%p299) target = $region48
        $region47: #{tpu_custom_call.1} parent=43 // pred_region
          %302 = dma.done %s295, 256
        $region48: #{tpu_custom_call.1} parent=43 // pred_fallthru
          _
        %s303 = sand.u32 %s27, 1
        %s304 = scalar_lea.sflag [#allocation9], %s303
        %s305 = sand.u32 %s61, 1
        %s306 = smul.addr %s305, 16
        %s307 = scalar_lea.vmem [#allocation8], %s306
        // Predicated region
        $region49: #{tpu_custom_call.1} parent=43 // pred_check
          %p308 = pneg %p74
        $region50: #{tpu_custom_call.1} parent=43 // pred_check_branch
          %310 = sbr.rel (%p308) target = $region52
        $region51: #{tpu_custom_call.1} parent=43 // pred_region
          %311 = dma.done %s304, 256
        $region52: #{tpu_custom_call.1} parent=43 // pred_fallthru
          _
        // Predicated region
        $region53: #{tpu_custom_call.1} parent=43 // pred_check
          %p312 = pneg %p95
        $region54: #{tpu_custom_call.1} parent=43 // pred_check_branch
          %314 = sbr.rel (%p312) target = $region56
        $region55: #{tpu_custom_call.1} parent=43 // pred_region
          %315 = dma.done [#allocation9], 4096
        $region56: #{tpu_custom_call.1} parent=43 // pred_fallthru
          _
        // Predicated region
        $region57: #{tpu_custom_call.1} parent=43 // pred_check
          %p316 = pneg %p116
        $region58: #{tpu_custom_call.1} parent=43 // pred_check_branch
          %318 = sbr.rel (%p316) target = $region60
        $region59: #{tpu_custom_call.1} parent=43 // pred_region
          %319 = dma.done [#allocation12], 4096
        $region60: #{tpu_custom_call.1} parent=43 // pred_fallthru
          _
        // Predicated region
        $region61: #{tpu_custom_call.1} parent=43 // pred_check
          %p320 = pneg %p137
        $region62: #{tpu_custom_call.1} parent=43 // pred_check_branch
          %322 = sbr.rel (%p320) target = $region64
        $region63: #{tpu_custom_call.1} parent=43 // pred_region
          %323 = dma.done [#allocation12], 512
        $region64: #{tpu_custom_call.1} parent=43 // pred_fallthru
          _
        %s324 = sand.u32 %s35, 1
        %s325 = scalar_lea.sflag [#allocation6], %s324
        %s326 = sand.u32 %s35, 1
        %s327 = smul.addr %s326, 16
        %s328 = scalar_lea.vmem [#allocation5], %s327
        %p329 = pneg %p48
        %p330 = pneg %p45
        %s331 = sand.u32 %s27, 1
        %s332 = scalar_lea.sflag [#allocation9], %s331
        %s333 = sand.u32 %s61, 1
        %s334 = smul.addr %s333, 16
        %s335 = scalar_lea.vmem [#allocation8], %s334
        %p336 = pneg %p74
        %p337 = pneg %p71
        %p338 = pneg %p95
        %p339 = pneg %p92
        %p340 = pneg %p116
        %p341 = pneg %p113
        %p342 = pneg %p137
        %p343 = pneg %p134
        %p344 = pneg %p158
        %p345 = pneg %p155
        %p346 = pneg %p184
        %p347 = pneg %p181
        %s348 = sand.u32 %s171, 1
        %s349 = scalar_lea.sflag [#allocation7], %s348
        %s350 = sand.u32 %s171, 1
        %s351 = smul.addr %s350, 32
        %s352 = scalar_lea.vmem [#allocation14], %s351
        %v353 = vld [vmem:[%s298] sm:$0xff]
        %v354 = vld [vmem:[%s298 + $0x8] sm:$0xff]
        %355 = vst [vmem:[%s352] sm:$0xff] %v353
        %356 = vst [vmem:[%s352 + $0x8] sm:$0xff] %v354
        %v357 = vld [vmem:[%s307] sm:$0xff]
        %v358 = vld [vmem:[%s307 + $0x8] sm:$0xff]
        %v359 = vld [vmem:[#allocation10] sm:$0xff]
        %v360 = vld [vmem:[#allocation10 + $0x8] sm:$0xff]
        %v361 = vld [vmem:[#allocation10 + $0x10] sm:$0xff]
        %v362 = vld [vmem:[#allocation10 + $0x18] sm:$0xff]
        %v363 = vld [vmem:[#allocation10 + $0x20] sm:$0xff]
        %v364 = vld [vmem:[#allocation10 + $0x28] sm:$0xff]
        %v365 = vld [vmem:[#allocation10 + $0x30] sm:$0xff]
        %v366 = vld [vmem:[#allocation10 + $0x38] sm:$0xff]
        %v367 = vld [vmem:[#allocation10 + $0x40] sm:$0xff]
        %v368 = vld [vmem:[#allocation10 + $0x48] sm:$0xff]
        %v369 = vld [vmem:[#allocation10 + $0x50] sm:$0xff]
        %v370 = vld [vmem:[#allocation10 + $0x58] sm:$0xff]
        %v371 = vld [vmem:[#allocation10 + $0x60] sm:$0xff]
        %v372 = vld [vmem:[#allocation10 + $0x68] sm:$0xff]
        %v373 = vld [vmem:[#allocation10 + $0x70] sm:$0xff]
        %v374 = vld [vmem:[#allocation10 + $0x78] sm:$0xff]
        %v375 = vld [vmem:[#allocation10 + $0x80] sm:$0xff]
        %v376 = vld [vmem:[#allocation10 + $0x88] sm:$0xff]
        %v377 = vld [vmem:[#allocation10 + $0x90] sm:$0xff]
        %v378 = vld [vmem:[#allocation10 + $0x98] sm:$0xff]
        %v379 = vld [vmem:[#allocation10 + $0xa0] sm:$0xff]
        %v380 = vld [vmem:[#allocation10 + $0xa8] sm:$0xff]
        %v381 = vld [vmem:[#allocation10 + $0xb0] sm:$0xff]
        %v382 = vld [vmem:[#allocation10 + $0xb8] sm:$0xff]
        %v383 = vld [vmem:[#allocation10 + $0xc0] sm:$0xff]
        %v384 = vld [vmem:[#allocation10 + $0xc8] sm:$0xff]
        %v385 = vld [vmem:[#allocation10 + $0xd0] sm:$0xff]
        %v386 = vld [vmem:[#allocation10 + $0xd8] sm:$0xff]
        %v387 = vld [vmem:[#allocation10 + $0xe0] sm:$0xff]
        %v388 = vld [vmem:[#allocation10 + $0xe8] sm:$0xff]
        %v389 = vld [vmem:[#allocation10 + $0xf0] sm:$0xff]
        %v390 = vld [vmem:[#allocation10 + $0xf8] sm:$0xff]
        %v391 = vld [vmem:[%s5] ss:$2 sm:$0x3]
        %v393 = vlaneseq
        %v394 = vshrl.u32 %v393, 7
        %v395 = vsub.s32 0, %v394
        %v396 = vrot.slane %v391, %v395
        %v397 = vlaneseq
        %v398 = vshrl.u32 %v397, 7
        %v399 = vsub.s32 1, %v398
        %v400 = vrot.slane %v391, %v399
        %v405 = vunpack.c.l.b16 %v357
        %v406 = vunpack.c.h.b16 %v357
        %v407 = vunpack.c.l.b16 %v358
        %v408 = vunpack.c.h.b16 %v358
        %v409 = vpack.c.b16 %v407, %v405
        %v410 = vpack.c.b16 %v408, %v406
        %v445 = vunpack.c.l.b16 %v359
        %v446 = vunpack.c.h.b16 %v359
        %v447 = vunpack.c.l.b16 %v360
        %v448 = vunpack.c.h.b16 %v360
        %v449 = vunpack.c.l.b16 %v361
        %v450 = vunpack.c.h.b16 %v361
        %v451 = vunpack.c.l.b16 %v362
        %v452 = vunpack.c.h.b16 %v362
        %v453 = vunpack.c.l.b16 %v363
        %v454 = vunpack.c.h.b16 %v363
        %v455 = vunpack.c.l.b16 %v364
        %v456 = vunpack.c.h.b16 %v364
        %v457 = vunpack.c.l.b16 %v365
        %v458 = vunpack.c.h.b16 %v365
        %v459 = vunpack.c.l.b16 %v366
        %v460 = vunpack.c.h.b16 %v366
        %v461 = vunpack.c.l.b16 %v367
        %v462 = vunpack.c.h.b16 %v367
        %v463 = vunpack.c.l.b16 %v368
        %v464 = vunpack.c.h.b16 %v368
        %v465 = vunpack.c.l.b16 %v369
        %v466 = vunpack.c.h.b16 %v369
        %v467 = vunpack.c.l.b16 %v370
        %v468 = vunpack.c.h.b16 %v370
        %v469 = vunpack.c.l.b16 %v371
        %v470 = vunpack.c.h.b16 %v371
        %v471 = vunpack.c.l.b16 %v372
        %v472 = vunpack.c.h.b16 %v372
        %v473 = vunpack.c.l.b16 %v373
        %v474 = vunpack.c.h.b16 %v373
        %v475 = vunpack.c.l.b16 %v374
        %v476 = vunpack.c.h.b16 %v374
        %v477 = vunpack.c.l.b16 %v375
        %v478 = vunpack.c.h.b16 %v375
        %v479 = vunpack.c.l.b16 %v376
        %v480 = vunpack.c.h.b16 %v376
        %v481 = vunpack.c.l.b16 %v377
        %v482 = vunpack.c.h.b16 %v377
        %v483 = vunpack.c.l.b16 %v378
        %v484 = vunpack.c.h.b16 %v378
        %v485 = vunpack.c.l.b16 %v379
        %v486 = vunpack.c.h.b16 %v379
        %v487 = vunpack.c.l.b16 %v380
        %v488 = vunpack.c.h.b16 %v380
        %v489 = vunpack.c.l.b16 %v381
        %v490 = vunpack.c.h.b16 %v381
        %v491 = vunpack.c.l.b16 %v382
        %v492 = vunpack.c.h.b16 %v382
        %v493 = vunpack.c.l.b16 %v383
        %v494 = vunpack.c.h.b16 %v383
        %v495 = vunpack.c.l.b16 %v384
        %v496 = vunpack.c.h.b16 %v384
        %v497 = vunpack.c.l.b16 %v385
        %v498 = vunpack.c.h.b16 %v385
        %v499 = vunpack.c.l.b16 %v386
        %v500 = vunpack.c.h.b16 %v386
        %v501 = vunpack.c.l.b16 %v387
        %v502 = vunpack.c.h.b16 %v387
        %v503 = vunpack.c.l.b16 %v388
        %v504 = vunpack.c.h.b16 %v388
        %v505 = vunpack.c.l.b16 %v389
        %v506 = vunpack.c.h.b16 %v389
        %v507 = vunpack.c.l.b16 %v390
        %v508 = vunpack.c.h.b16 %v390
        %v509 = vpack.c.b16 %v447, %v445
        %v510 = vpack.c.b16 %v448, %v446
        %v511 = vpack.c.b16 %v451, %v449
        %v512 = vpack.c.b16 %v452, %v450
        %v513 = vpack.c.b16 %v455, %v453
        %v514 = vpack.c.b16 %v456, %v454
        %v515 = vpack.c.b16 %v459, %v457
        %v516 = vpack.c.b16 %v460, %v458
        %v517 = vpack.c.b16 %v463, %v461
        %v518 = vpack.c.b16 %v464, %v462
        %v519 = vpack.c.b16 %v467, %v465
        %v520 = vpack.c.b16 %v468, %v466
        %v521 = vpack.c.b16 %v471, %v469
        %v522 = vpack.c.b16 %v472, %v470
        %v523 = vpack.c.b16 %v475, %v473
        %v524 = vpack.c.b16 %v476, %v474
        %v525 = vpack.c.b16 %v479, %v477
        %v526 = vpack.c.b16 %v480, %v478
        %v527 = vpack.c.b16 %v483, %v481
        %v528 = vpack.c.b16 %v484, %v482
        %v529 = vpack.c.b16 %v487, %v485
        %v530 = vpack.c.b16 %v488, %v486
        %v531 = vpack.c.b16 %v491, %v489
        %v532 = vpack.c.b16 %v492, %v490
        %v533 = vpack.c.b16 %v495, %v493
        %v534 = vpack.c.b16 %v496, %v494
        %v535 = vpack.c.b16 %v499, %v497
        %v536 = vpack.c.b16 %v500, %v498
        %v537 = vpack.c.b16 %v503, %v501
        %v538 = vpack.c.b16 %v504, %v502
        %v539 = vpack.c.b16 %v507, %v505
        %v540 = vpack.c.b16 %v508, %v506
        %573 = vmatprep.subr.bf16.mxu0 %v510
        %574 = vmatpush1.bf16.msra.mxu0 %v509
        %575 = vmatprep.subr.bf16.mxu0 %v512
        %576 = vmatpush1.bf16.msra.mxu0 %v511
        %577 = vmatprep.subr.bf16.mxu0 %v514
        %578 = vmatpush1.bf16.msra.mxu0 %v513
        %579 = vmatprep.subr.bf16.mxu0 %v516
        %580 = vmatpush1.bf16.msra.mxu0 %v515
        %581 = vmatprep.subr.bf16.mxu0 %v518
        %582 = vmatpush1.bf16.msra.mxu0 %v517
        %583 = vmatprep.subr.bf16.mxu0 %v520
        %584 = vmatpush1.bf16.msra.mxu0 %v519
        %585 = vmatprep.subr.bf16.mxu0 %v522
        %586 = vmatpush1.bf16.msra.mxu0 %v521
        %587 = vmatprep.subr.bf16.mxu0 %v524
        %588 = vmatpush1.bf16.msra.mxu0 %v523
        %589 = vmatprep.subr.bf16.mxu0 %v526
        %590 = vmatpush1.bf16.msra.mxu0 %v525
        %591 = vmatprep.subr.bf16.mxu0 %v528
        %592 = vmatpush1.bf16.msra.mxu0 %v527
        %593 = vmatprep.subr.bf16.mxu0 %v530
        %594 = vmatpush1.bf16.msra.mxu0 %v529
        %595 = vmatprep.subr.bf16.mxu0 %v532
        %596 = vmatpush1.bf16.msra.mxu0 %v531
        %597 = vmatprep.subr.bf16.mxu0 %v534
        %598 = vmatpush1.bf16.msra.mxu0 %v533
        %599 = vmatprep.subr.bf16.mxu0 %v536
        %600 = vmatpush1.bf16.msra.mxu0 %v535
        %601 = vmatprep.subr.bf16.mxu0 %v538
        %602 = vmatpush1.bf16.msra.mxu0 %v537
        %603 = vmatprep.subr.bf16.mxu0 %v540
        %604 = vmatpush1.bf16.msra.mxu0 %v539
        %605 = vmatprep.mubr.bf16.mxu0 %v410
        %606 = vmatmul.mubr.bf16.gmra.mrb[0].mxu0 %v409
        %v607 = vpop.f32.mrb[0].mxu0
        %v608 = vadd.f32 %v396, %v607
        %v609 = vpop.f32.mrb[0].mxu0
        %v610 = vadd.f32 %v400, %v609
        %v611 = vpop.f32.mrb[0].mxu0
        %v612 = vadd.f32 %v396, %v611
        %v613 = vpop.f32.mrb[0].mxu0
        %v614 = vadd.f32 %v400, %v613
        %615 = vdwg.mxu0
        %v616 = vmax.f32 %v608, 0.0
        %v617 = vmax.f32 %v610, 0.0
        %v618 = vmax.f32 %v612, 0.0
        %v619 = vmax.f32 %v614, 0.0
        %v620 = vlaneseq
        %vm621 = vcmp.ge.s32.totalorder %v620, 0
        %vm622 = vcmp.lt.s32.totalorder %v620, 256
        %vm623 = vmand %vm621, %vm622
        %624 = vst.msk [vmem:[#allocation2] ss:$8 sm:$0x3] %vm623, 0.0
        %625 = vst.msk [vmem:[#allocation2] ss:$8 sm:$0x0] %vm623, 0.0
        %s626 = scalar_lea.vmem [#allocation2], 33
        %627 = vst.msk [vmem:[%s626] ss:$8 sm:$0x3] %vm623, 0.0
        %628 = vst.msk [vmem:[%s626] ss:$8 sm:$0x0] %vm623, 0.0
        %vm633 = vcmask 1040384
        %v634 = vrot.slane %v616, 7
        %v635 = vrot.slane %v617, 7
        %v636 = vrot.slane %v618, 7
        %v637 = vsel %vm633, %v634, %v636
        %v638 = vrot.slane %v619, 7
        %v639 = vsel %vm633, %v635, %v638
        %646 = vst [vmem:[#allocation2] sm:$0xfe] %v634
        %647 = vst [vmem:[#allocation2 + $0x8] sm:$0xfe] %v635
        %648 = vst [vmem:[#allocation2 + $0x10] sm:$0xff] %v637
        %649 = vst [vmem:[#allocation2 + $0x18] sm:$0xff] %v639
        %650 = vst [vmem:[#allocation2 + $0x20] sm:$0x1] %v636
        %651 = vst [vmem:[#allocation2 + $0x28] sm:$0x1] %v638
        %v652 = vld [vmem:[#allocation2] sm:$0xff]
        %v653 = vld [vmem:[#allocation2 + $0x8] sm:$0xff]
        %v654 = vld [vmem:[#allocation2 + $0x10] sm:$0xff]
        %v655 = vld [vmem:[#allocation2 + $0x18] sm:$0xff]
        %v656 = vld [vmem:[#allocation2 + $0x20] sm:$0x3]
        %v657 = vld [vmem:[#allocation2 + $0x28] sm:$0x3]
        %v658 = vlaneseq
        %v659 = vand.u32 %v658, 127
        %v660 = vadd.s32 %v659, 128
        %vm661 = vcmp.ge.s32.totalorder %v659, 16
        %vm662 = vcmp.ge.s32.totalorder %v660, 16
        %663 = vrot.lane.b32.xlu0 %v652, 16
        %v664 = vpop.permute.xlu0 %663
        %665 = vrot.lane.b32.xlu0 %v654, 16
        %v666 = vpop.permute.xlu0 %665
        %667 = vrot.lane.b32.xlu0 %v656, 16
        %v668 = vpop.permute.xlu0 %667
        %669 = vrot.lane.b32.xlu0 %v653, 16
        %v670 = vpop.permute.xlu0 %669
        %671 = vrot.lane.b32.xlu0 %v655, 16
        %v672 = vpop.permute.xlu0 %671
        %673 = vrot.lane.b32.xlu0 %v657, 16
        %v674 = vpop.permute.xlu0 %673
        %vm675 = vcmp.lt.s32.totalorder %v659, 16
        %v676 = vsel %vm675, %v664, %v670
        %v677 = vsel %vm675, %v666, %v672
        %v678 = vsel %vm675, %v668, %v674
        %v679 = vsel %vm675, %v670, %v664
        %v680 = vsel %vm675, %v672, %v666
        %v681 = vsel %vm675, %v674, %v668
        %v682 = vsel %vm661, %v679, 0.0
        %v683 = vsel %vm662, %v676, 0.0
        %v684 = vsel %vm661, %v680, 0.0
        %v685 = vsel %vm662, %v677, 0.0
        %v686 = vsel %vm661, %v681, 0.0
        %v687 = vsel %vm662, %v678, 0.0
        %688 = vst [vmem:[#allocation3] sm:$0xff] %v682
        %689 = vst [vmem:[#allocation3 + $0x8] sm:$0xff] %v683
        %690 = vst [vmem:[#allocation3 + $0x10] sm:$0xff] %v684
        %691 = vst [vmem:[#allocation3 + $0x18] sm:$0xff] %v685
        %692 = vst [vmem:[#allocation3 + $0x20] sm:$0x3] %v686
        %693 = vst [vmem:[#allocation3 + $0x28] sm:$0x3] %v687
        %vm694 = vcmp.lt.s32.totalorder %v659, 240
        %vm695 = vcmp.lt.s32.totalorder %v660, 240
        %696 = vrot.lane.b32.xlu0 %v652, 112
        %v697 = vpop.permute.xlu0 %696
        %698 = vrot.lane.b32.xlu0 %v654, 112
        %v699 = vpop.permute.xlu0 %698
        %700 = vrot.lane.b32.xlu0 %v656, 112
        %v701 = vpop.permute.xlu0 %700
        %702 = vrot.lane.b32.xlu0 %v653, 112
        %v703 = vpop.permute.xlu0 %702
        %704 = vrot.lane.b32.xlu0 %v655, 112
        %v705 = vpop.permute.xlu0 %704
        %706 = vrot.lane.b32.xlu0 %v657, 112
        %v707 = vpop.permute.xlu0 %706
        %vm708 = vcmp.lt.s32.totalorder %v659, 112
        %v709 = vsel %vm708, %v697, %v703
        %v710 = vsel %vm708, %v699, %v705
        %v711 = vsel %vm708, %v701, %v707
        %v712 = vsel %vm708, %v703, %v697
        %v713 = vsel %vm708, %v705, %v699
        %v714 = vsel %vm708, %v707, %v701
        %v715 = vsel %vm694, %v709, 0.0
        %v716 = vsel %vm695, %v712, 0.0
        %v717 = vsel %vm694, %v710, 0.0
        %v718 = vsel %vm695, %v713, 0.0
        %v719 = vsel %vm694, %v711, 0.0
        %v720 = vsel %vm695, %v714, 0.0
        %721 = vst [vmem:[#allocation4] sm:$0xff] %v715
        %722 = vst [vmem:[#allocation4 + $0x8] sm:$0xff] %v716
        %723 = vst [vmem:[#allocation4 + $0x10] sm:$0xff] %v717
        %724 = vst [vmem:[#allocation4 + $0x18] sm:$0xff] %v718
        %725 = vst [vmem:[#allocation4 + $0x20] sm:$0x3] %v719
        %726 = vst [vmem:[#allocation4 + $0x28] sm:$0x3] %v720
        %v727 = vld [vmem:[#allocation13] ss:$8 sm:$0x3]
        %v728 = vld [vmem:[#allocation3] sm:$0xff]
        %v729 = vld [vmem:[#allocation3 + $0x8] sm:$0xff]
        %v730 = vld [vmem:[#allocation3 + $0x10] sm:$0xff]
        %v731 = vld [vmem:[#allocation3 + $0x18] sm:$0xff]
        %v733 = vlaneseq
        %v734 = vshrl.u32 %v733, 7
        %v735 = vsub.s32 0, %v734
        %v736 = vrot.slane %v727, %v735
        %v737 = vlaneseq
        %v738 = vshrl.u32 %v737, 7
        %v739 = vsub.s32 1, %v738
        %v740 = vrot.slane %v727, %v739
        %v743 = vmul.f32 %v728, %v736
        %v744 = vmul.f32 %v729, %v740
        %v745 = vmul.f32 %v730, %v736
        %v746 = vmul.f32 %v731, %v740
        %s747 = scalar_lea.vmem [#allocation13], 1
        %v748 = vld [vmem:[%s747] ss:$8 sm:$0x3]
        %v749 = vld [vmem:[#allocation2] sm:$0xff]
        %v750 = vld [vmem:[#allocation2 + $0x8] sm:$0xff]
        %v751 = vld [vmem:[#allocation2 + $0x10] sm:$0xff]
        %v752 = vld [vmem:[#allocation2 + $0x18] sm:$0xff]
        %v754 = vlaneseq
        %v755 = vshrl.u32 %v754, 7
        %v756 = vsub.s32 0, %v755
        %v757 = vrot.slane %v748, %v756
        %v758 = vlaneseq
        %v759 = vshrl.u32 %v758, 7
        %v760 = vsub.s32 1, %v759
        %v761 = vrot.slane %v748, %v760
        %v764 = vmul.f32 %v749, %v757
        %v765 = vmul.f32 %v750, %v761
        %v766 = vmul.f32 %v751, %v757
        %v767 = vmul.f32 %v752, %v761
        %v768 = vadd.f32 %v743, %v764
        %v769 = vadd.f32 %v744, %v765
        %v770 = vadd.f32 %v745, %v766
        %v771 = vadd.f32 %v746, %v767
        %s772 = scalar_lea.vmem [#allocation13], 2
        %v773 = vld [vmem:[%s772] ss:$8 sm:$0x3]
        %v774 = vld [vmem:[#allocation4] sm:$0xff]
        %v775 = vld [vmem:[#allocation4 + $0x8] sm:$0xff]
        %v776 = vld [vmem:[#allocation4 + $0x10] sm:$0xff]
        %v777 = vld [vmem:[#allocation4 + $0x18] sm:$0xff]
        %v779 = vlaneseq
        %v780 = vshrl.u32 %v779, 7
        %v781 = vsub.s32 0, %v780
        %v782 = vrot.slane %v773, %v781
        %v783 = vlaneseq
        %v784 = vshrl.u32 %v783, 7
        %v785 = vsub.s32 1, %v784
        %v786 = vrot.slane %v773, %v785
        %v789 = vmul.f32 %v774, %v782
        %v790 = vmul.f32 %v775, %v786
        %v791 = vmul.f32 %v776, %v782
        %v792 = vmul.f32 %v777, %v786
        %v793 = vadd.f32 %v768, %v789
        %v794 = vadd.f32 %v769, %v790
        %v795 = vadd.f32 %v770, %v791
        %v796 = vadd.f32 %v771, %v792
        %s797 = scalar_lea.vmem [#allocation13], 3
        %v798 = vld [vmem:[%s797] ss:$8 sm:$0x3]
        %v799 = vld [vmem:[#allocation3] sm:$0xfe]
        %v800 = vld [vmem:[#allocation3 + $0x8] sm:$0xfe]
        %v801 = vld [vmem:[#allocation3 + $0x20] sm:$0x1]
        %v802 = vld [vmem:[#allocation3 + $0x28] sm:$0x1]
        %v804 = vlaneseq
        %v805 = vshrl.u32 %v804, 7
        %v806 = vsub.s32 0, %v805
        %v807 = vrot.slane %v798, %v806
        %v808 = vlaneseq
        %v809 = vshrl.u32 %v808, 7
        %v810 = vsub.s32 1, %v809
        %v811 = vrot.slane %v798, %v810
        %v814 = vmul.f32 %v799, %v807
        %v815 = vmul.f32 %v800, %v811
        %v816 = vmul.f32 %v730, %v807
        %v817 = vmul.f32 %v731, %v811
        %v818 = vmul.f32 %v801, %v807
        %v819 = vmul.f32 %v802, %v811
        %vm826 = vcmask 1046528
        %v827 = vrot.slane %v814, 1
        %v828 = vrot.slane %v816, 1
        %v829 = vsel %vm826, %v827, %v828
        %v830 = vrot.slane %v815, 1
        %v831 = vrot.slane %v817, 1
        %v832 = vsel %vm826, %v830, %v831
        %v833 = vrot.slane %v818, 1
        %v834 = vsel %vm826, %v828, %v833
        %v835 = vrot.slane %v819, 1
        %v836 = vsel %vm826, %v831, %v835
        %v841 = vadd.f32 %v793, %v829
        %v842 = vadd.f32 %v794, %v832
        %v843 = vadd.f32 %v795, %v834
        %v844 = vadd.f32 %v796, %v836
        %s845 = scalar_lea.vmem [#allocation13], 4
        %v846 = vld [vmem:[%s845] ss:$8 sm:$0x3]
        %v847 = vld [vmem:[#allocation2] sm:$0xfe]
        %v848 = vld [vmem:[#allocation2 + $0x8] sm:$0xfe]
        %v849 = vld [vmem:[#allocation2 + $0x20] sm:$0x1]
        %v850 = vld [vmem:[#allocation2 + $0x28] sm:$0x1]
        %v852 = vlaneseq
        %v853 = vshrl.u32 %v852, 7
        %v854 = vsub.s32 0, %v853
        %v855 = vrot.slane %v846, %v854
        %v856 = vlaneseq
        %v857 = vshrl.u32 %v856, 7
        %v858 = vsub.s32 1, %v857
        %v859 = vrot.slane %v846, %v858
        %v862 = vmul.f32 %v847, %v855
        %v863 = vmul.f32 %v848, %v859
        %v864 = vmul.f32 %v751, %v855
        %v865 = vmul.f32 %v752, %v859
        %v866 = vmul.f32 %v849, %v855
        %v867 = vmul.f32 %v850, %v859
        %v874 = vrot.slane %v862, 1
        %v875 = vrot.slane %v864, 1
        %v876 = vsel %vm826, %v874, %v875
        %v877 = vrot.slane %v863, 1
        %v878 = vrot.slane %v865, 1
        %v879 = vsel %vm826, %v877, %v878
        %v880 = vrot.slane %v866, 1
        %v881 = vsel %vm826, %v875, %v880
        %v882 = vrot.slane %v867, 1
        %v883 = vsel %vm826, %v878, %v882
        %v888 = vadd.f32 %v841, %v876
        %v889 = vadd.f32 %v842, %v879
        %v890 = vadd.f32 %v843, %v881
        %v891 = vadd.f32 %v844, %v883
        %s892 = scalar_lea.vmem [#allocation13], 5
        %v893 = vld [vmem:[%s892] ss:$8 sm:$0x3]
        %v894 = vld [vmem:[#allocation4] sm:$0xfe]
        %v895 = vld [vmem:[#allocation4 + $0x8] sm:$0xfe]
        %v896 = vld [vmem:[#allocation4 + $0x20] sm:$0x1]
        %v897 = vld [vmem:[#allocation4 + $0x28] sm:$0x1]
        %v899 = vlaneseq
        %v900 = vshrl.u32 %v899, 7
        %v901 = vsub.s32 0, %v900
        %v902 = vrot.slane %v893, %v901
        %v903 = vlaneseq
        %v904 = vshrl.u32 %v903, 7
        %v905 = vsub.s32 1, %v904
        %v906 = vrot.slane %v893, %v905
        %v909 = vmul.f32 %v894, %v902
        %v910 = vmul.f32 %v895, %v906
        %v911 = vmul.f32 %v776, %v902
        %v912 = vmul.f32 %v777, %v906
        %v913 = vmul.f32 %v896, %v902
        %v914 = vmul.f32 %v897, %v906
        %v921 = vrot.slane %v909, 1
        %v922 = vrot.slane %v911, 1
        %v923 = vsel %vm826, %v921, %v922
        %v924 = vrot.slane %v910, 1
        %v925 = vrot.slane %v912, 1
        %v926 = vsel %vm826, %v924, %v925
        %v927 = vrot.slane %v913, 1
        %v928 = vsel %vm826, %v922, %v927
        %v929 = vrot.slane %v914, 1
        %v930 = vsel %vm826, %v925, %v929
        %v935 = vadd.f32 %v888, %v923
        %v936 = vadd.f32 %v889, %v926
        %v937 = vadd.f32 %v890, %v928
        %v938 = vadd.f32 %v891, %v930
        %s939 = scalar_lea.vmem [#allocation13], 6
        %v940 = vld [vmem:[%s939] ss:$8 sm:$0x3]
        %v941 = vld [vmem:[#allocation3] sm:$0xfc]
        %v942 = vld [vmem:[#allocation3 + $0x8] sm:$0xfc]
        %v943 = vld [vmem:[#allocation3 + $0x20] sm:$0x3]
        %v944 = vld [vmem:[#allocation3 + $0x28] sm:$0x3]
        %v946 = vlaneseq
        %v947 = vshrl.u32 %v946, 7
        %v948 = vsub.s32 0, %v947
        %v949 = vrot.slane %v940, %v948
        %v950 = vlaneseq
        %v951 = vshrl.u32 %v950, 7
        %v952 = vsub.s32 1, %v951
        %v953 = vrot.slane %v940, %v952
        %v956 = vmul.f32 %v941, %v949
        %v957 = vmul.f32 %v942, %v953
        %v958 = vmul.f32 %v730, %v949
        %v959 = vmul.f32 %v731, %v953
        %v960 = vmul.f32 %v943, %v949
        %v961 = vmul.f32 %v944, %v953
        %vm968 = vcmask 1045504
        %v969 = vrot.slane %v956, 2
        %v970 = vrot.slane %v958, 2
        %v971 = vsel %vm968, %v969, %v970
        %v972 = vrot.slane %v957, 2
        %v973 = vrot.slane %v959, 2
        %v974 = vsel %vm968, %v972, %v973
        %v975 = vrot.slane %v960, 2
        %v976 = vsel %vm968, %v970, %v975
        %v977 = vrot.slane %v961, 2
        %v978 = vsel %vm968, %v973, %v977
        %v983 = vadd.f32 %v935, %v971
        %v984 = vadd.f32 %v936, %v974
        %v985 = vadd.f32 %v937, %v976
        %v986 = vadd.f32 %v938, %v978
        %s987 = scalar_lea.vmem [#allocation13], 7
        %v988 = vld [vmem:[%s987] ss:$8 sm:$0x3]
        %v989 = vld [vmem:[#allocation2] sm:$0xfc]
        %v990 = vld [vmem:[#allocation2 + $0x8] sm:$0xfc]
        %v991 = vld [vmem:[#allocation2 + $0x20] sm:$0x3]
        %v992 = vld [vmem:[#allocation2 + $0x28] sm:$0x3]
        %v994 = vlaneseq
        %v995 = vshrl.u32 %v994, 7
        %v996 = vsub.s32 0, %v995
        %v997 = vrot.slane %v988, %v996
        %v998 = vlaneseq
        %v999 = vshrl.u32 %v998, 7
        %v1000 = vsub.s32 1, %v999
        %v1001 = vrot.slane %v988, %v1000
        %v1004 = vmul.f32 %v989, %v997
        %v1005 = vmul.f32 %v990, %v1001
        %v1006 = vmul.f32 %v751, %v997
        %v1007 = vmul.f32 %v752, %v1001
        %v1008 = vmul.f32 %v991, %v997
        %v1009 = vmul.f32 %v992, %v1001
        %v1016 = vrot.slane %v1004, 2
        %v1017 = vrot.slane %v1006, 2
        %v1018 = vsel %vm968, %v1016, %v1017
        %v1019 = vrot.slane %v1005, 2
        %v1020 = vrot.slane %v1007, 2
        %v1021 = vsel %vm968, %v1019, %v1020
        %v1022 = vrot.slane %v1008, 2
        %v1023 = vsel %vm968, %v1017, %v1022
        %v1024 = vrot.slane %v1009, 2
        %v1025 = vsel %vm968, %v1020, %v1024
        %v1030 = vadd.f32 %v983, %v1018
        %v1031 = vadd.f32 %v984, %v1021
        %v1032 = vadd.f32 %v985, %v1023
        %v1033 = vadd.f32 %v986, %v1025
        %s1034 = scalar_lea.vmem [#allocation13], 16
        %v1035 = vld [vmem:[%s1034] ss:$8 sm:$0x3]
        %v1036 = vld [vmem:[#allocation4] sm:$0xfc]
        %v1037 = vld [vmem:[#allocation4 + $0x8] sm:$0xfc]
        %v1038 = vld [vmem:[#allocation4 + $0x20] sm:$0x3]
        %v1039 = vld [vmem:[#allocation4 + $0x28] sm:$0x3]
        %v1041 = vlaneseq
        %v1042 = vshrl.u32 %v1041, 7
        %v1043 = vsub.s32 0, %v1042
        %v1044 = vrot.slane %v1035, %v1043
        %v1045 = vlaneseq
        %v1046 = vshrl.u32 %v1045, 7
        %v1047 = vsub.s32 1, %v1046
        %v1048 = vrot.slane %v1035, %v1047
        %v1051 = vmul.f32 %v1036, %v1044
        %v1052 = vmul.f32 %v1037, %v1048
        %v1053 = vmul.f32 %v776, %v1044
        %v1054 = vmul.f32 %v777, %v1048
        %v1055 = vmul.f32 %v1038, %v1044
        %v1056 = vmul.f32 %v1039, %v1048
        %v1063 = vrot.slane %v1051, 2
        %v1064 = vrot.slane %v1053, 2
        %v1065 = vsel %vm968, %v1063, %v1064
        %v1066 = vrot.slane %v1052, 2
        %v1067 = vrot.slane %v1054, 2
        %v1068 = vsel %vm968, %v1066, %v1067
        %v1069 = vrot.slane %v1055, 2
        %v1070 = vsel %vm968, %v1064, %v1069
        %v1071 = vrot.slane %v1056, 2
        %v1072 = vsel %vm968, %v1067, %v1071
        %v1077 = vadd.f32 %v1030, %v1065
        %v1078 = vadd.f32 %v1031, %v1068
        %v1079 = vadd.f32 %v1032, %v1070
        %v1080 = vadd.f32 %v1033, %v1072
        %v1081 = vpack.c.bf16 %v1079, %v1077
        %v1082 = vpack.c.bf16 %v1080, %v1078
        %v1083 = vld [vmem:[#allocation11] sm:$0xff]
        %v1084 = vld [vmem:[#allocation11 + $0x8] sm:$0xff]
        %v1085 = vld [vmem:[#allocation11 + $0x10] sm:$0xff]
        %v1086 = vld [vmem:[#allocation11 + $0x18] sm:$0xff]
        %v1087 = vld [vmem:[#allocation11 + $0x20] sm:$0xff]
        %v1088 = vld [vmem:[#allocation11 + $0x28] sm:$0xff]
        %v1089 = vld [vmem:[#allocation11 + $0x30] sm:$0xff]
        %v1090 = vld [vmem:[#allocation11 + $0x38] sm:$0xff]
        %v1091 = vld [vmem:[#allocation11 + $0x40] sm:$0xff]
        %v1092 = vld [vmem:[#allocation11 + $0x48] sm:$0xff]
        %v1093 = vld [vmem:[#allocation11 + $0x50] sm:$0xff]
        %v1094 = vld [vmem:[#allocation11 + $0x58] sm:$0xff]
        %v1095 = vld [vmem:[#allocation11 + $0x60] sm:$0xff]
        %v1096 = vld [vmem:[#allocation11 + $0x68] sm:$0xff]
        %v1097 = vld [vmem:[#allocation11 + $0x70] sm:$0xff]
        %v1098 = vld [vmem:[#allocation11 + $0x78] sm:$0xff]
        %v1099 = vld [vmem:[#allocation11 + $0x80] sm:$0xff]
        %v1100 = vld [vmem:[#allocation11 + $0x88] sm:$0xff]
        %v1101 = vld [vmem:[#allocation11 + $0x90] sm:$0xff]
        %v1102 = vld [vmem:[#allocation11 + $0x98] sm:$0xff]
        %v1103 = vld [vmem:[#allocation11 + $0xa0] sm:$0xff]
        %v1104 = vld [vmem:[#allocation11 + $0xa8] sm:$0xff]
        %v1105 = vld [vmem:[#allocation11 + $0xb0] sm:$0xff]
        %v1106 = vld [vmem:[#allocation11 + $0xb8] sm:$0xff]
        %v1107 = vld [vmem:[#allocation11 + $0xc0] sm:$0xff]
        %v1108 = vld [vmem:[#allocation11 + $0xc8] sm:$0xff]
        %v1109 = vld [vmem:[#allocation11 + $0xd0] sm:$0xff]
        %v1110 = vld [vmem:[#allocation11 + $0xd8] sm:$0xff]
        %v1111 = vld [vmem:[#allocation11 + $0xe0] sm:$0xff]
        %v1112 = vld [vmem:[#allocation11 + $0xe8] sm:$0xff]
        %v1113 = vld [vmem:[#allocation11 + $0xf0] sm:$0xff]
        %v1114 = vld [vmem:[#allocation11 + $0xf8] sm:$0xff]
        %s1115 = scalar_lea.vmem %s5, 1
        %v1116 = vld [vmem:[%s1115] ss:$2 sm:$0x3]
        %v1118 = vlaneseq
        %v1119 = vshrl.u32 %v1118, 7
        %v1120 = vsub.s32 0, %v1119
        %v1121 = vrot.slane %v1116, %v1120
        %v1122 = vlaneseq
        %v1123 = vshrl.u32 %v1122, 7
        %v1124 = vsub.s32 1, %v1123
        %v1125 = vrot.slane %v1116, %v1124
        %v1160 = vunpack.c.l.b16 %v1083
        %v1161 = vunpack.c.h.b16 %v1083
        %v1162 = vunpack.c.l.b16 %v1084
        %v1163 = vunpack.c.h.b16 %v1084
        %v1164 = vunpack.c.l.b16 %v1085
        %v1165 = vunpack.c.h.b16 %v1085
        %v1166 = vunpack.c.l.b16 %v1086
        %v1167 = vunpack.c.h.b16 %v1086
        %v1168 = vunpack.c.l.b16 %v1087
        %v1169 = vunpack.c.h.b16 %v1087
        %v1170 = vunpack.c.l.b16 %v1088
        %v1171 = vunpack.c.h.b16 %v1088
        %v1172 = vunpack.c.l.b16 %v1089
        %v1173 = vunpack.c.h.b16 %v1089
        %v1174 = vunpack.c.l.b16 %v1090
        %v1175 = vunpack.c.h.b16 %v1090
        %v1176 = vunpack.c.l.b16 %v1091
        %v1177 = vunpack.c.h.b16 %v1091
        %v1178 = vunpack.c.l.b16 %v1092
        %v1179 = vunpack.c.h.b16 %v1092
        %v1180 = vunpack.c.l.b16 %v1093
        %v1181 = vunpack.c.h.b16 %v1093
        %v1182 = vunpack.c.l.b16 %v1094
        %v1183 = vunpack.c.h.b16 %v1094
        %v1184 = vunpack.c.l.b16 %v1095
        %v1185 = vunpack.c.h.b16 %v1095
        %v1186 = vunpack.c.l.b16 %v1096
        %v1187 = vunpack.c.h.b16 %v1096
        %v1188 = vunpack.c.l.b16 %v1097
        %v1189 = vunpack.c.h.b16 %v1097
        %v1190 = vunpack.c.l.b16 %v1098
        %v1191 = vunpack.c.h.b16 %v1098
        %v1192 = vunpack.c.l.b16 %v1099
        %v1193 = vunpack.c.h.b16 %v1099
        %v1194 = vunpack.c.l.b16 %v1100
        %v1195 = vunpack.c.h.b16 %v1100
        %v1196 = vunpack.c.l.b16 %v1101
        %v1197 = vunpack.c.h.b16 %v1101
        %v1198 = vunpack.c.l.b16 %v1102
        %v1199 = vunpack.c.h.b16 %v1102
        %v1200 = vunpack.c.l.b16 %v1103
        %v1201 = vunpack.c.h.b16 %v1103
        %v1202 = vunpack.c.l.b16 %v1104
        %v1203 = vunpack.c.h.b16 %v1104
        %v1204 = vunpack.c.l.b16 %v1105
        %v1205 = vunpack.c.h.b16 %v1105
        %v1206 = vunpack.c.l.b16 %v1106
        %v1207 = vunpack.c.h.b16 %v1106
        %v1208 = vunpack.c.l.b16 %v1107
        %v1209 = vunpack.c.h.b16 %v1107
        %v1210 = vunpack.c.l.b16 %v1108
        %v1211 = vunpack.c.h.b16 %v1108
        %v1212 = vunpack.c.l.b16 %v1109
        %v1213 = vunpack.c.h.b16 %v1109
        %v1214 = vunpack.c.l.b16 %v1110
        %v1215 = vunpack.c.h.b16 %v1110
        %v1216 = vunpack.c.l.b16 %v1111
        %v1217 = vunpack.c.h.b16 %v1111
        %v1218 = vunpack.c.l.b16 %v1112
        %v1219 = vunpack.c.h.b16 %v1112
        %v1220 = vunpack.c.l.b16 %v1113
        %v1221 = vunpack.c.h.b16 %v1113
        %v1222 = vunpack.c.l.b16 %v1114
        %v1223 = vunpack.c.h.b16 %v1114
        %v1224 = vpack.c.b16 %v1162, %v1160
        %v1225 = vpack.c.b16 %v1163, %v1161
        %v1226 = vpack.c.b16 %v1166, %v1164
        %v1227 = vpack.c.b16 %v1167, %v1165
        %v1228 = vpack.c.b16 %v1170, %v1168
        %v1229 = vpack.c.b16 %v1171, %v1169
        %v1230 = vpack.c.b16 %v1174, %v1172
        %v1231 = vpack.c.b16 %v1175, %v1173
        %v1232 = vpack.c.b16 %v1178, %v1176
        %v1233 = vpack.c.b16 %v1179, %v1177
        %v1234 = vpack.c.b16 %v1182, %v1180
        %v1235 = vpack.c.b16 %v1183, %v1181
        %v1236 = vpack.c.b16 %v1186, %v1184
        %v1237 = vpack.c.b16 %v1187, %v1185
        %v1238 = vpack.c.b16 %v1190, %v1188
        %v1239 = vpack.c.b16 %v1191, %v1189
        %v1240 = vpack.c.b16 %v1194, %v1192
        %v1241 = vpack.c.b16 %v1195, %v1193
        %v1242 = vpack.c.b16 %v1198, %v1196
        %v1243 = vpack.c.b16 %v1199, %v1197
        %v1244 = vpack.c.b16 %v1202, %v1200
        %v1245 = vpack.c.b16 %v1203, %v1201
        %v1246 = vpack.c.b16 %v1206, %v1204
        %v1247 = vpack.c.b16 %v1207, %v1205
        %v1248 = vpack.c.b16 %v1210, %v1208
        %v1249 = vpack.c.b16 %v1211, %v1209
        %v1250 = vpack.c.b16 %v1214, %v1212
        %v1251 = vpack.c.b16 %v1215, %v1213
        %v1252 = vpack.c.b16 %v1218, %v1216
        %v1253 = vpack.c.b16 %v1219, %v1217
        %v1254 = vpack.c.b16 %v1222, %v1220
        %v1255 = vpack.c.b16 %v1223, %v1221
        %1288 = vmatprep.subr.bf16.mxu0 %v1225
        %1289 = vmatpush1.bf16.msra.mxu0 %v1224
        %1290 = vmatprep.subr.bf16.mxu0 %v1227
        %1291 = vmatpush1.bf16.msra.mxu0 %v1226
        %1292 = vmatprep.subr.bf16.mxu0 %v1229
        %1293 = vmatpush1.bf16.msra.mxu0 %v1228
        %1294 = vmatprep.subr.bf16.mxu0 %v1231
        %1295 = vmatpush1.bf16.msra.mxu0 %v1230
        %1296 = vmatprep.subr.bf16.mxu0 %v1233
        %1297 = vmatpush1.bf16.msra.mxu0 %v1232
        %1298 = vmatprep.subr.bf16.mxu0 %v1235
        %1299 = vmatpush1.bf16.msra.mxu0 %v1234
        %1300 = vmatprep.subr.bf16.mxu0 %v1237
        %1301 = vmatpush1.bf16.msra.mxu0 %v1236
        %1302 = vmatprep.subr.bf16.mxu0 %v1239
        %1303 = vmatpush1.bf16.msra.mxu0 %v1238
        %1304 = vmatprep.subr.bf16.mxu0 %v1241
        %1305 = vmatpush1.bf16.msra.mxu0 %v1240
        %1306 = vmatprep.subr.bf16.mxu0 %v1243
        %1307 = vmatpush1.bf16.msra.mxu0 %v1242
        %1308 = vmatprep.subr.bf16.mxu0 %v1245
        %1309 = vmatpush1.bf16.msra.mxu0 %v1244
        %1310 = vmatprep.subr.bf16.mxu0 %v1247
        %1311 = vmatpush1.bf16.msra.mxu0 %v1246
        %1312 = vmatprep.subr.bf16.mxu0 %v1249
        %1313 = vmatpush1.bf16.msra.mxu0 %v1248
        %1314 = vmatprep.subr.bf16.mxu0 %v1251
        %1315 = vmatpush1.bf16.msra.mxu0 %v1250
        %1316 = vmatprep.subr.bf16.mxu0 %v1253
        %1317 = vmatpush1.bf16.msra.mxu0 %v1252
        %1318 = vmatprep.subr.bf16.mxu0 %v1255
        %1319 = vmatpush1.bf16.msra.mxu0 %v1254
        %1320 = vmatprep.mubr.bf16.mxu0 %v1082
        %1321 = vmatmul.mubr.bf16.gmra.mrb[0].mxu0 %v1081
        %v1322 = vpop.f32.mrb[0].mxu0
        %v1323 = vadd.f32 %v1121, %v1322
        %v1324 = vpop.f32.mrb[0].mxu0
        %v1325 = vadd.f32 %v1125, %v1324
        %v1326 = vpop.f32.mrb[0].mxu0
        %v1327 = vadd.f32 %v1121, %v1326
        %v1328 = vpop.f32.mrb[0].mxu0
        %v1329 = vadd.f32 %v1125, %v1328
        %1330 = vdwg.mxu0
        %v1331 = vmax.f32 %v1323, 0.0
        %v1332 = vmax.f32 %v1325, 0.0
        %v1333 = vmax.f32 %v1327, 0.0
        %v1334 = vmax.f32 %v1329, 0.0
        %v1335 = vpack.c.bf16 %v1333, %v1331
        %v1336 = vpack.c.bf16 %v1334, %v1332
        %v1339 = vunpack.c.l.b16 %v1335
        %v1340 = vunpack.c.l.b16 %v1336
        %v1341 = vunpack.c.h.b16 %v1335
        %v1342 = vunpack.c.h.b16 %v1336
        %v1343 = vpack.c.b16 %v1340, %v1339
        %v1344 = vpack.c.b16 %v1342, %v1341
        %s1347 = scalar_lea.vmem %s352, 16 [#allocation14]
        %1348 = vst [vmem:[%s1347] sm:$0xff] %v1343
        %1349 = vst [vmem:[%s1347 + $0x8] sm:$0xff] %v1344
        %s1350 = sand.u32 %s171, 1
        %s1351 = scalar_lea.sflag [#allocation7], %s1350
        %s1352 = sand.u32 %s171, 1
        %s1353 = smul.addr %s1352, 32
        %s1354 = scalar_lea.vmem [#allocation14], %s1353
        // Predicated region
        $region65: #{tpu_custom_call.1} parent=43 // pred_check
          %p1355 = pneg %p181
        $region66: #{tpu_custom_call.1} parent=43 // pred_check_branch
          %1357 = sbr.rel (%p1355) target = $region68
        $region67: #{tpu_custom_call.1} parent=43 // pred_region
          #allocation16 [shape = 'u32[6]{0}', space=smem, size = 0x18, scoped, tag = 'DMA stride descriptor']
          %s1359 = ssub.s32 512, 512
          %1360 = vsyncadd %s1351, %s1359
          %s1361 = smul.addr %s27, 4
          %s1362 = smul.addr %s1361, 64
          %s1363 = scalar_lea.hbm %s6, %s1362
          %s1365 = sshll.u32 1, 14
          %s1366 = sxor.u32 4294967295, %s1365
          %s1369 = sshll.u32 7, 18
          %s1370 = sxor.u32 4294967295, %s1369
          %s1371 = sand.u32 0, %s1370
          %s1373 = sor.u32 %s1371, 0
          %s1375 = sshll.u32 3, 24
          %s1376 = sxor.u32 4294967295, %s1375
          %s1377 = sand.u32 %s1373, %s1376
          %s1379 = sor.u32 %s1377, 0
          %s1380 = sshll.u32 %s1354, 4
          %s1381 = int_to_ptr.vmem [resolvable:$true] %s1380
          %1387 = sst [smem:[#allocation16]] 256
          %s1388 = scalar_lea.smem [#allocation16], 1
          %1389 = sst [smem:[%s1388]] 512
          %s1390 = scalar_lea.smem [#allocation16], 2
          %1391 = sst [smem:[%s1390]] 2
          %s1392 = scalar_lea.smem [#allocation16], 3
          %1393 = sst [smem:[%s1392]] 128
          %s1394 = scalar_lea.smem [#allocation16], 4
          %1395 = sst [smem:[%s1394]] 128
          %s1396 = scalar_lea.smem [#allocation16], 5
          %1397 = sst [smem:[%s1396]] 8
          %1399 = dma.general %s1381, 512, %s1363, %s1351, [#allocation15], [#allocation16], %s1379, 0
        $region68: #{tpu_custom_call.1} parent=43 // pred_fallthru
          _
      $region44: #{tpu_custom_call.1} parent=5 // pred_fallthru
        _
      %p1400 = scmp.le.s32.totalorder 2, %s22
      // Predicated region
      $region69: #{tpu_custom_call.1} parent=5 // pred_check
        %p1401 = pneg %p1400
      $region70: #{tpu_custom_call.1} parent=5 // pred_check_branch
        %1403 = sbr.rel (%p1401) target = $region72
      $region71: #{tpu_custom_call.1} parent=5 // pred_region
        %s1404 = ssub.s32 %s22, 2
        // Predicated region
        $region73: #{tpu_custom_call.1} parent=71 // pred_check
          %p1405 = pneg %p187
        $region74: #{tpu_custom_call.1} parent=71 // pred_check_branch
          %1407 = sbr.rel (%p1405) target = $region76
        $region75: #{tpu_custom_call.1} parent=71 // pred_region
          %s1408 = sand.u32 %s172, 1
          %s1409 = scalar_lea.sflag [#allocation7], %s1408
          %s1410 = sand.u32 %s172, 1
          %s1411 = smul.addr %s1410, 32
          %s1412 = scalar_lea.vmem [#allocation14], %s1411
          %1413 = dma.done %s1409, 512
        $region76: #{tpu_custom_call.1} parent=71 // pred_fallthru
          _
      $region72: #{tpu_custom_call.1} parent=5 // pred_fallthru
        _
    $region6: #{tpu_custom_call.1} parent=1 // loop_footer
      %s26 = sadd.s32 1, %s22
    $region7: #{tpu_custom_call.1} parent=1 // loop_footer_branch
      %21 = sbr.rel target = $region3
    $region8: #{tpu_custom_call.1} parent=1 // loop_exit
      _
    %1414 = vsyncpa [#allocation6], 1
    %s1415 = scalar_lea.sflag [#allocation6], 1
    %1416 = vsyncpa %s1415, 1
    %1417 = vsyncpa [#allocation9], 1
    %s1418 = scalar_lea.sflag [#allocation9], 1
    %1419 = vsyncpa %s1418, 1
    %1420 = vsyncpa [#allocation12], 1
    %1421 = vsyncpa [#allocation7], 1
    %s1422 = scalar_lea.sflag [#allocation7], 1
    %1423 = vsyncpa %s1422, 1

</llo_original>
